<compile_context>
chip_gen: v5e
topology: v5e:2x2
jax: 0.10.0
libtpu: 0.0.40
codegen_flags: <defaults>
</compile_context>

<pallas_src>
import functools

import jax
import jax.numpy as jnp
from jax.experimental import pallas as pl
from jax.experimental.pallas import tpu as pltpu

# ---- small synthetic sizes (stand-ins for resnet50 / projection_dim / hidden_dim)
BATCH = 2
C, H_IMG, W_IMG = 4, 16, 16
D_IN = C * H_IMG * W_IMG          # flattened image (1024)
FEAT = 64                         # backbone out_features
HID = 32                          # hidden_dim (512 in the real module)
PROJ = 16                         # projection_dim (128 in the real module)
MOMENTUM = 0.999
BN_EPS = 1e-5
TK = 512                          # D_IN tile (reduction axis); >=512 rows per v5e/v6e guidance


def _byol_kernel(
    x1_ref, x2_ref,                 # (B, TK) each              -- view tiles
    qW_ref, qb_ref,                 # (TK, FEAT), (1, FEAT)     -- query encoder (read-only)
    kW_ref, kb_ref,                 # (TK, FEAT), (1, FEAT)     -- key encoder (aliased)
    w1_ref, b1_ref, g_ref, beta_ref, w2_ref, b2_ref,
    z_ref,                          # (4B, PROJ)  rows: [z1; z2; tz1; tz2]
    kW_new_ref,                     # (TK, FEAT)  aliased with kW_ref (streamed per tile)
    kb_new_ref,                     # (1, FEAT)   aliased with kb_ref
    acc_q, acc_k,                   # VMEM scratch (2B, FEAT) f32 accumulators
    *, momentum, batch,
):
    k = pl.program_id(0)
    one_minus_m = 1.0 - momentum

    @pl.when(k == 0)
    def _init():
        acc_q[...] = jnp.zeros_like(acc_q)
        acc_k[...] = jnp.zeros_like(acc_k)
        # Momentum EMA of the key bias (done once; tiny).
        kb_new_ref[...] = kb_ref[...] * momentum + qb_ref[...] * one_minus_m

    # Streamed per-tile momentum EMA of the key weights, written straight into
    # the aliased output tile.  Pure FMA: no roll, no iota, no select, and no
    # writeback of the untouched query half.
    kW_new = kW_ref[...] * momentum + qW_ref[...] * one_minus_m
    kW_new_ref[...] = kW_new

    # Row-stack the two views inside the kernel and run both encoders' partial
    # matmuls for this D_IN tile.  Query uses the untouched weights, key uses
    # the freshly updated ones (matches PyTorch forward ordering: z1/z2 first,
    # then _momentum_update(), then the target forward).
    x = jnp.concatenate([x1_ref[...], x2_ref[...]], axis=0)          # (2B, TK)
    acc_q[...] += jnp.dot(x, qW_ref[...], preferred_element_type=jnp.float32)
    acc_k[...] += jnp.dot(x, kW_new, preferred_element_type=jnp.float32)

    @pl.when(k == pl.num_programs(0) - 1)
    def _finalize():
        fq = jnp.maximum(acc_q[...] + qb_ref[...], 0.0)              # [q(x1); q(x2)]
        fk = jnp.maximum(acc_k[...] + kb_new_ref[...], 0.0)          # [k(x1); k(x2)]
        # Sublane-only concat (no cross-lane shuffle between the MXU stages).
        f_all = jnp.concatenate([fq, fk], axis=0)                    # (4B, FEAT)

        # Shared projector MLP, batched over the 4 (branch, view) calls.
        h = jnp.dot(f_all, w1_ref[...],
                    preferred_element_type=jnp.float32) + b1_ref[...]

        # BatchNorm1d (training mode, biased variance).  Statistics per
        # ORIGINAL projector call: group rows into (4, B, HID) and reduce over
        # the batch axis only (NOT over the fused 4B axis).
        h4 = h.reshape(4, batch, HID)
        mu = jnp.mean(h4, axis=1, keepdims=True)
        var = jnp.mean((h4 - mu) * (h4 - mu), axis=1, keepdims=True)
        hn = (h4 - mu) * jax.lax.rsqrt(var + BN_EPS)
        hn = g_ref[...] * hn + beta_ref[...]
        hn = jnp.maximum(hn, 0.0).reshape(4 * batch, HID)

        # TODO(synk): at the real PROJ=128 this store is lane-dense; at the
        # synthetic PROJ=16 it is a masked partial store (tiny, accepted).
        z_ref[...] = (jnp.dot(hn, w2_ref[...],
                              preferred_element_type=jnp.float32) + b2_ref[...])


def _forward_impl(x1, x2, qW, qb, kW, kb, w1, b1, gamma, beta, w2, b2):
    B = x1.shape[0]
    x1f = x1.reshape(B, D_IN).astype(jnp.float32)   # contiguous flatten, no copy
    x2f = x2.reshape(B, D_IN).astype(jnp.float32)

    kernel = functools.partial(_byol_kernel, momentum=MOMENTUM, batch=B)

    def full(shape):
        return pl.BlockSpec(shape, lambda k: (0, 0))

    grid_spec = pltpu.PrefetchScalarGridSpec(
        num_scalar_prefetch=0,
        grid=(D_IN // TK,),                                  # reduction axis last
        in_specs=[
            pl.BlockSpec((B, TK), lambda k: (0, k)),         # x1 tile
            pl.BlockSpec((B, TK), lambda k: (0, k)),         # x2 tile
            pl.BlockSpec((TK, FEAT), lambda k: (k, 0)),      # qW tile
            full((1, FEAT)),                                 # qb
            pl.BlockSpec((TK, FEAT), lambda k: (k, 0)),      # kW tile
            full((1, FEAT)),                                 # kb
            full((FEAT, HID)),                               # w1
            full((1, HID)),                                  # b1
            full((1, HID)),                                  # gamma
            full((1, HID)),                                  # beta
            full((HID, PROJ)),                               # w2
            full((1, PROJ)),                                 # b2
        ],
        out_specs=(
            full((4 * B, PROJ)),                             # z slab (resident)
            pl.BlockSpec((TK, FEAT), lambda k: (k, 0)),      # kW_new (streamed)
            full((1, FEAT)),                                 # kb_new
        ),
        scratch_shapes=[
            pltpu.VMEM((2 * B, FEAT), jnp.float32),          # acc_q
            pltpu.VMEM((2 * B, FEAT), jnp.float32),          # acc_k
        ],
    )

    out_shape = (
        jax.ShapeDtypeStruct((4 * B, PROJ), jnp.float32),    # [z1; z2; tz1; tz2]
        jax.ShapeDtypeStruct((D_IN, FEAT), jnp.float32),     # updated kW
        jax.ShapeDtypeStruct((1, FEAT), jnp.float32),        # updated kb
    )

    return pl.pallas_call(
        kernel,
        out_shape=out_shape,
        grid_spec=grid_spec,
        # In-place momentum update of ONLY the key-encoder params
        # (input kW -> output kW_new, input kb -> output kb_new).
        input_output_aliases={4: 1, 5: 2},
        compiler_params=pltpu.CompilerParams(
            dimension_semantics=("arbitrary",)),
    )(x1f, x2f, qW, qb, kW, kb, w1, b1, gamma, beta, w2, b2)


# Donate the key-encoder params so the in-place alias is realized end-to-end.
_forward_jit = jax.jit(_forward_impl, donate_argnums=(4, 5))


def byol_forward(x1, x2, params):
    """x1, x2: (B, C, H, W) float32.

    Returns ((z1, z2, target_z1, target_z2), new_params) where new_params
    carries the momentum-updated key-encoder params (query params untouched),
    mirroring the in-place _momentum_update() of the PyTorch module.
    """
    B = x1.shape[0]
    z_slab, kW_new, kb_new = _forward_jit(
        x1, x2, params["qW"], params["qb"], params["kW"], params["kb"],
        params["w1"], params["b1"], params["gamma"], params["beta"],
        params["w2"], params["b2"])
    z1 = z_slab[0 * B:1 * B]
    z2 = z_slab[1 * B:2 * B]
    tz1 = z_slab[2 * B:3 * B]
    tz2 = z_slab[3 * B:4 * B]
    new_params = dict(params, kW=kW_new, kb=kb_new)
    return (z1, z2, tz1, tz2), new_params


def init_params(key):
    ks = jax.random.split(key, 8)
    scale = lambda fan_in: 1.0 / jnp.sqrt(jnp.float32(fan_in))
    qW = jax.random.normal(ks[0], (D_IN, FEAT), jnp.float32) * scale(D_IN)
    qb = jax.random.normal(ks[1], (1, FEAT), jnp.float32) * 0.01
    kW = jax.random.normal(ks[2], (D_IN, FEAT), jnp.float32) * scale(D_IN)
    kb = jax.random.normal(ks[3], (1, FEAT), jnp.float32) * 0.01
    w1 = jax.random.normal(ks[4], (FEAT, HID), jnp.float32) * scale(FEAT)
    b1 = jax.random.normal(ks[5], (1, HID), jnp.float32) * 0.01
    gamma = jnp.ones((1, HID), jnp.float32)
    beta = jnp.zeros((1, HID), jnp.float32)
    w2 = jax.random.normal(ks[6], (HID, PROJ), jnp.float32) * scale(HID)
    b2 = jax.random.normal(ks[7], (1, PROJ), jnp.float32) * 0.01
    return dict(qW=qW, qb=qb, kW=kW, kb=kb, w1=w1, b1=b1,
                gamma=gamma, beta=beta, w2=w2, b2=b2)


def _reference(x1, x2, p):
    """Pure-JAX reference of the PyTorch forward (training-mode BN)."""
    def encoder(x, W, b):
        return jnp.maximum(x.reshape(x.shape[0], -1) @ W + b, 0.0)

    def projector(f):
        h = f @ p["w1"] + p["b1"]
        mu = h.mean(axis=0, keepdims=True)
        var = ((h - mu) ** 2).mean(axis=0, keepdims=True)
        hn = (h - mu) / jnp.sqrt(var + BN_EPS)
        hn = jnp.maximum(p["gamma"] * hn + p["beta"], 0.0)
        return hn @ p["w2"] + p["b2"]

    z1 = projector(encoder(x1, p["qW"], p["qb"]))
    z2 = projector(encoder(x2, p["qW"], p["qb"]))
    kW = p["kW"] * MOMENTUM + p["qW"] * (1.0 - MOMENTUM)
    kb = p["kb"] * MOMENTUM + p["qb"] * (1.0 - MOMENTUM)
    tz1 = projector(encoder(x1, kW, kb))
    tz2 = projector(encoder(x2, kW, kb))
    return (z1, z2, tz1, tz2), kW, kb


if __name__ == "__main__":
    key = jax.random.PRNGKey(0)
    k_p, k_x1, k_x2 = jax.random.split(key, 3)
    params = init_params(k_p)
    x1 = jax.random.normal(k_x1, (BATCH, C, H_IMG, W_IMG), jnp.float32)
    x2 = jax.random.normal(k_x2, (BATCH, C, H_IMG, W_IMG), jnp.float32)

    # Reference computed BEFORE the kernel call (kW/kb buffers are donated).
    (r_z1, r_z2, r_tz1, r_tz2), r_kW, r_kb = _reference(x1, x2, params)

    (z1, z2, tz1, tz2), new_params = byol_forward(x1, x2, params)
    outs = jax.block_until_ready(
        (z1, z2, tz1, tz2, new_params["kW"], new_params["kb"]))
    z1, z2, tz1, tz2, kW_new, kb_new = outs

    assert z1.shape == (BATCH, PROJ) and z2.shape == (BATCH, PROJ)
    assert tz1.shape == (BATCH, PROJ) and tz2.shape == (BATCH, PROJ)
    assert kW_new.shape == (D_IN, FEAT) and kb_new.shape == (1, FEAT)
    assert all(bool(jnp.all(jnp.isfinite(o))) for o in outs)

    for got, ref in ((z1, r_z1), (z2, r_z2), (tz1, r_tz1), (tz2, r_tz2)):
        assert bool(jnp.allclose(got, ref, rtol=2e-3, atol=2e-3)), "z mismatch"
    assert bool(jnp.allclose(kW_new, r_kW, rtol=1e-5, atol=1e-6)), "kW mismatch"
    assert bool(jnp.allclose(kb_new, r_kb, rtol=1e-5, atol=1e-6)), "kb mismatch"

    print("KERNEL_OK")
</pallas_src>

<mosaic_0001>
module attributes {stable_mosaic.version = 11 : i64} {
  func.func @_byol_kernel(%arg0: i32, %arg1: memref<2x512xf32, #tpu.memory_space<vmem>>, %arg2: memref<2x512xf32, #tpu.memory_space<vmem>>, %arg3: memref<512x64xf32, #tpu.memory_space<vmem>>, %arg4: memref<1x64xf32, #tpu.memory_space<vmem>>, %arg5: memref<512x64xf32, #tpu.memory_space<vmem>>, %arg6: memref<1x64xf32, #tpu.memory_space<vmem>>, %arg7: memref<64x32xf32, #tpu.memory_space<vmem>>, %arg8: memref<1x32xf32, #tpu.memory_space<vmem>>, %arg9: memref<1x32xf32, #tpu.memory_space<vmem>>, %arg10: memref<1x32xf32, #tpu.memory_space<vmem>>, %arg11: memref<32x16xf32, #tpu.memory_space<vmem>>, %arg12: memref<1x16xf32, #tpu.memory_space<vmem>>, %arg13: memref<8x16xf32, #tpu.memory_space<vmem>>, %arg14: memref<512x64xf32, #tpu.memory_space<vmem>>, %arg15: memref<1x64xf32, #tpu.memory_space<vmem>>, %arg16: memref<4x64xf32, #tpu.memory_space<vmem>>, %arg17: memref<4x64xf32, #tpu.memory_space<vmem>>) attributes {dimension_semantics = [#tpu.dimension_semantics<arbitrary>], iteration_bounds = array<i64: 2>, scalar_prefetch = 0 : i64, scratch_operands = 2 : i64, tpu.core_type = #tpu.core_type<tc>, window_params = [{transform_indices = @transform_0, window_bounds = array<i64: 2, 512>}, {transform_indices = @transform_1, window_bounds = array<i64: 2, 512>}, {transform_indices = @transform_2, window_bounds = array<i64: 512, 64>}, {pipeline_mode = #tpu.pipeline_mode<synchronous>, transform_indices = @transform_3, window_bounds = array<i64: 1, 64>}, {transform_indices = @transform_4, window_bounds = array<i64: 512, 64>}, {pipeline_mode = #tpu.pipeline_mode<synchronous>, transform_indices = @transform_5, window_bounds = array<i64: 1, 64>}, {pipeline_mode = #tpu.pipeline_mode<synchronous>, transform_indices = @transform_6, window_bounds = array<i64: 64, 32>}, {pipeline_mode = #tpu.pipeline_mode<synchronous>, transform_indices = @transform_7, window_bounds = array<i64: 1, 32>}, {pipeline_mode = #tpu.pipeline_mode<synchronous>, transform_indices = @transform_8, window_bounds = array<i64: 1, 32>}, {pipeline_mode = #tpu.pipeline_mode<synchronous>, transform_indices = @transform_9, window_bounds = array<i64: 1, 32>}, {pipeline_mode = #tpu.pipeline_mode<synchronous>, transform_indices = @transform_10, window_bounds = array<i64: 32, 16>}, {pipeline_mode = #tpu.pipeline_mode<synchronous>, transform_indices = @transform_11, window_bounds = array<i64: 1, 16>}, {pipeline_mode = #tpu.pipeline_mode<synchronous>, transform_indices = @transform_12, window_bounds = array<i64: 8, 16>}, {transform_indices = @transform_13, window_bounds = array<i64: 512, 64>}, {pipeline_mode = #tpu.pipeline_mode<synchronous>, transform_indices = @transform_14, window_bounds = array<i64: 1, 64>}]} {
    %c0_i32 = arith.constant 0 : i32
    %0 = arith.cmpi eq, %arg0, %c0_i32 : i32
    %1 = arith.extui %0 : i1 to i32
    %c0_i32_0 = arith.constant 0 : i32
    %2 = arith.cmpi ne, %1, %c0_i32_0 : i32
    scf.if %2 {
      %cst_24 = arith.constant 0.000000e+00 : f32
      %26 = vector.broadcast %cst_24 : f32 to vector<4x64xf32>
      %c0_25 = arith.constant 0 : index
      %c0_26 = arith.constant 0 : index
      %27 = vector.load %arg16[%c0_25, %c0_26] : memref<4x64xf32, #tpu.memory_space<vmem>>, vector<4x64xf32>
      tpu.vector_store %arg16[%c0_25, %c0_26], %26 {strides = array<i32>} : memref<4x64xf32, #tpu.memory_space<vmem>>, vector<4x64xf32>,
      %cst_27 = arith.constant 0.000000e+00 : f32
      %28 = vector.broadcast %cst_27 : f32 to vector<4x64xf32>
      %c0_28 = arith.constant 0 : index
      %c0_29 = arith.constant 0 : index
      %29 = vector.load %arg17[%c0_28, %c0_29] : memref<4x64xf32, #tpu.memory_space<vmem>>, vector<4x64xf32>
      tpu.vector_store %arg17[%c0_28, %c0_29], %28 {strides = array<i32>} : memref<4x64xf32, #tpu.memory_space<vmem>>, vector<4x64xf32>,
      %c0_30 = arith.constant 0 : index
      %c0_31 = arith.constant 0 : index
      %30 = vector.load %arg6[%c0_30, %c0_31] : memref<1x64xf32, #tpu.memory_space<vmem>>, vector<1x64xf32>
      %cst_32 = arith.constant 9.990000e-01 : f32
      %31 = vector.broadcast %cst_32 : f32 to vector<1x64xf32>
      %32 = arith.mulf %30, %31 : vector<1x64xf32>
      %c0_33 = arith.constant 0 : index
      %c0_34 = arith.constant 0 : index
      %33 = vector.load %arg4[%c0_33, %c0_34] : memref<1x64xf32, #tpu.memory_space<vmem>>, vector<1x64xf32>
      %cst_35 = arith.constant 1.000000e-03 : f32
      %34 = vector.broadcast %cst_35 : f32 to vector<1x64xf32>
      %35 = arith.mulf %33, %34 : vector<1x64xf32>
      %36 = arith.addf %32, %35 : vector<1x64xf32>
      %c0_36 = arith.constant 0 : index
      %c0_37 = arith.constant 0 : index
      %37 = vector.load %arg15[%c0_36, %c0_37] : memref<1x64xf32, #tpu.memory_space<vmem>>, vector<1x64xf32>
      tpu.vector_store %arg15[%c0_36, %c0_37], %36 {strides = array<i32>} : memref<1x64xf32, #tpu.memory_space<vmem>>, vector<1x64xf32>,
    } else {
    }
    %c0 = arith.constant 0 : index
    %c0_1 = arith.constant 0 : index
    %3 = vector.load %arg5[%c0, %c0_1] : memref<512x64xf32, #tpu.memory_space<vmem>>, vector<512x64xf32>
    %cst = arith.constant 9.990000e-01 : f32
    %4 = vector.broadcast %cst : f32 to vector<512x64xf32>
    %5 = arith.mulf %3, %4 : vector<512x64xf32>
    %c0_2 = arith.constant 0 : index
    %c0_3 = arith.constant 0 : index
    %6 = vector.load %arg3[%c0_2, %c0_3] : memref<512x64xf32, #tpu.memory_space<vmem>>, vector<512x64xf32>
    %cst_4 = arith.constant 1.000000e-03 : f32
    %7 = vector.broadcast %cst_4 : f32 to vector<512x64xf32>
    %8 = arith.mulf %6, %7 : vector<512x64xf32>
    %9 = arith.addf %5, %8 : vector<512x64xf32>
    %c0_5 = arith.constant 0 : index
    %c0_6 = arith.constant 0 : index
    %10 = vector.load %arg14[%c0_5, %c0_6] : memref<512x64xf32, #tpu.memory_space<vmem>>, vector<512x64xf32>
    tpu.vector_store %arg14[%c0_5, %c0_6], %9 {strides = array<i32>} : memref<512x64xf32, #tpu.memory_space<vmem>>, vector<512x64xf32>,
    %c0_7 = arith.constant 0 : index
    %c0_8 = arith.constant 0 : index
    %11 = vector.load %arg1[%c0_7, %c0_8] : memref<2x512xf32, #tpu.memory_space<vmem>>, vector<2x512xf32>
    %c0_9 = arith.constant 0 : index
    %c0_10 = arith.constant 0 : index
    %12 = vector.load %arg2[%c0_9, %c0_10] : memref<2x512xf32, #tpu.memory_space<vmem>>, vector<2x512xf32>
    %13 = tpu.concatenate %11, %12 in 0 : vector<2x512xf32>, vector<2x512xf32> -> vector<4x512xf32>
    %c0_11 = arith.constant 0 : index
    %c0_12 = arith.constant 0 : index
    %14 = vector.load %arg16[%c0_11, %c0_12] : memref<4x64xf32, #tpu.memory_space<vmem>>, vector<4x64xf32>
    %c0_13 = arith.constant 0 : index
    %c0_14 = arith.constant 0 : index
    %15 = vector.load %arg3[%c0_13, %c0_14] : memref<512x64xf32, #tpu.memory_space<vmem>>, vector<512x64xf32>
    %cst_15 = arith.constant dense<0.000000e+00> : vector<4x64xf32>
    %16 = tpu.matmul %13, %15, %cst_15 {dimension_numbers = #tpu.dot_dimension_numbers<[1], [0], [0], [1], [0, 0, 1, 1], [], []>} : vector<4x512xf32>, vector<512x64xf32>, vector<4x64xf32> -> vector<4x64xf32>
    %17 = arith.addf %14, %16 : vector<4x64xf32>
    %c0_16 = arith.constant 0 : index
    %c0_17 = arith.constant 0 : index
    %18 = vector.load %arg16[%c0_16, %c0_17] : memref<4x64xf32, #tpu.memory_space<vmem>>, vector<4x64xf32>
    tpu.vector_store %arg16[%c0_16, %c0_17], %17 {strides = array<i32>} : memref<4x64xf32, #tpu.memory_space<vmem>>, vector<4x64xf32>,
    %c0_18 = arith.constant 0 : index
    %c0_19 = arith.constant 0 : index
    %19 = vector.load %arg17[%c0_18, %c0_19] : memref<4x64xf32, #tpu.memory_space<vmem>>, vector<4x64xf32>
    %cst_20 = arith.constant dense<0.000000e+00> : vector<4x64xf32>
    %20 = tpu.matmul %13, %9, %cst_20 {dimension_numbers = #tpu.dot_dimension_numbers<[1], [0], [0], [1], [0, 0, 1, 1], [], []>} : vector<4x512xf32>, vector<512x64xf32>, vector<4x64xf32> -> vector<4x64xf32>
    %21 = arith.addf %19, %20 : vector<4x64xf32>
    %c0_21 = arith.constant 0 : index
    %c0_22 = arith.constant 0 : index
    %22 = vector.load %arg17[%c0_21, %c0_22] : memref<4x64xf32, #tpu.memory_space<vmem>>, vector<4x64xf32>
    tpu.vector_store %arg17[%c0_21, %c0_22], %21 {strides = array<i32>} : memref<4x64xf32, #tpu.memory_space<vmem>>, vector<4x64xf32>,
    %c1_i32 = arith.constant 1 : i32
    %23 = arith.cmpi eq, %arg0, %c1_i32 : i32
    %24 = arith.extui %23 : i1 to i32
    %c0_i32_23 = arith.constant 0 : i32
    %25 = arith.cmpi ne, %24, %c0_i32_23 : i32
    scf.if %25 {
      %c0_24 = arith.constant 0 : index
      %c0_25 = arith.constant 0 : index
      %26 = vector.load %arg16[%c0_24, %c0_25] : memref<4x64xf32, #tpu.memory_space<vmem>>, vector<4x64xf32>
      %c0_26 = arith.constant 0 : index
      %c0_27 = arith.constant 0 : index
      %27 = vector.load %arg4[%c0_26, %c0_27] : memref<1x64xf32, #tpu.memory_space<vmem>>, vector<1x64xf32>
      %28 = vector.broadcast %27 : vector<1x64xf32> to vector<4x64xf32>
      %29 = arith.addf %26, %28 : vector<4x64xf32>
      %cst_28 = arith.constant 0.000000e+00 : f32
      %30 = vector.broadcast %cst_28 : f32 to vector<4x64xf32>
      %31 = arith.maximumf %29, %30 : vector<4x64xf32>
      %c0_29 = arith.constant 0 : index
      %c0_30 = arith.constant 0 : index
      %32 = vector.load %arg17[%c0_29, %c0_30] : memref<4x64xf32, #tpu.memory_space<vmem>>, vector<4x64xf32>
      %c0_31 = arith.constant 0 : index
      %c0_32 = arith.constant 0 : index
      %33 = vector.load %arg15[%c0_31, %c0_32] : memref<1x64xf32, #tpu.memory_space<vmem>>, vector<1x64xf32>
      %34 = vector.broadcast %33 : vector<1x64xf32> to vector<4x64xf32>
      %35 = arith.addf %32, %34 : vector<4x64xf32>
      %cst_33 = arith.constant 0.000000e+00 : f32
      %36 = vector.broadcast %cst_33 : f32 to vector<4x64xf32>
      %37 = arith.maximumf %35, %36 : vector<4x64xf32>
      %38 = tpu.concatenate %31, %37 in 0 : vector<4x64xf32>, vector<4x64xf32> -> vector<8x64xf32>
      %c0_34 = arith.constant 0 : index
      %c0_35 = arith.constant 0 : index
      %39 = vector.load %arg7[%c0_34, %c0_35] : memref<64x32xf32, #tpu.memory_space<vmem>>, vector<64x32xf32>
      %cst_36 = arith.constant dense<0.000000e+00> : vector<8x32xf32>
      %40 = tpu.matmul %38, %39, %cst_36 {dimension_numbers = #tpu.dot_dimension_numbers<[1], [0], [0], [1], [0, 0, 1, 1], [], []>} : vector<8x64xf32>, vector<64x32xf32>, vector<8x32xf32> -> vector<8x32xf32>
      %c0_37 = arith.constant 0 : index
      %c0_38 = arith.constant 0 : index
      %41 = vector.load %arg8[%c0_37, %c0_38] : memref<1x32xf32, #tpu.memory_space<vmem>>, vector<1x32xf32>
      %42 = vector.broadcast %41 : vector<1x32xf32> to vector<8x32xf32>
      %43 = arith.addf %40, %42 : vector<8x32xf32>
      %44 = vector.shape_cast %43 : vector<8x32xf32> to vector<4x2x32xf32>
      %cst_39 = arith.constant dense<0.000000e+00> : vector<4x32xf32>
      %45 = vector.multi_reduction <add>, %44, %cst_39 [1] : vector<4x2x32xf32> to vector<4x32xf32>
      %46 = vector.shape_cast %45 : vector<4x32xf32> to vector<4x1x32xf32>
      %cst_40 = arith.constant 2.000000e+00 : f32
      %47 = vector.broadcast %cst_40 : f32 to vector<4x1x32xf32>
      %48 = arith.divf %46, %47 : vector<4x1x32xf32>
      %49 = vector.broadcast %48 : vector<4x1x32xf32> to vector<4x2x32xf32>
      %50 = arith.subf %44, %49 : vector<4x2x32xf32>
      %51 = vector.broadcast %48 : vector<4x1x32xf32> to vector<4x2x32xf32>
      %52 = arith.subf %44, %51 : vector<4x2x32xf32>
      %53 = arith.mulf %50, %52 : vector<4x2x32xf32>
      %cst_41 = arith.constant dense<0.000000e+00> : vector<4x32xf32>
      %54 = vector.multi_reduction <add>, %53, %cst_41 [1] : vector<4x2x32xf32> to vector<4x32xf32>
      %55 = vector.shape_cast %54 : vector<4x32xf32> to vector<4x1x32xf32>
      %cst_42 = arith.constant 2.000000e+00 : f32
      %56 = vector.broadcast %cst_42 : f32 to vector<4x1x32xf32>
      %57 = arith.divf %55, %56 : vector<4x1x32xf32>
      %58 = vector.broadcast %48 : vector<4x1x32xf32> to vector<4x2x32xf32>
      %59 = arith.subf %44, %58 : vector<4x2x32xf32>
      %cst_43 = arith.constant 9.99999974E-6 : f32
      %60 = vector.broadcast %cst_43 : f32 to vector<4x1x32xf32>
      %61 = arith.addf %57, %60 : vector<4x1x32xf32>
      %62 = math.rsqrt %61 : vector<4x1x32xf32>
      %63 = vector.broadcast %62 : vector<4x1x32xf32> to vector<4x2x32xf32>
      %64 = arith.mulf %59, %63 : vector<4x2x32xf32>
      %c0_44 = arith.constant 0 : index
      %c0_45 = arith.constant 0 : index
      %65 = vector.load %arg9[%c0_44, %c0_45] : memref<1x32xf32, #tpu.memory_space<vmem>>, vector<1x32xf32>
      %66 = vector.shape_cast %65 : vector<1x32xf32> to vector<1x1x32xf32>
      %67 = vector.broadcast %66 : vector<1x1x32xf32> to vector<4x2x32xf32>
      %68 = arith.mulf %67, %64 : vector<4x2x32xf32>
      %c0_46 = arith.constant 0 : index
      %c0_47 = arith.constant 0 : index
      %69 = vector.load %arg10[%c0_46, %c0_47] : memref<1x32xf32, #tpu.memory_space<vmem>>, vector<1x32xf32>
      %70 = vector.shape_cast %69 : vector<1x32xf32> to vector<1x1x32xf32>
      %71 = vector.broadcast %70 : vector<1x1x32xf32> to vector<4x2x32xf32>
      %72 = arith.addf %68, %71 : vector<4x2x32xf32>
      %cst_48 = arith.constant 0.000000e+00 : f32
      %73 = vector.broadcast %cst_48 : f32 to vector<4x2x32xf32>
      %74 = arith.maximumf %72, %73 : vector<4x2x32xf32>
      %75 = vector.shape_cast %74 : vector<4x2x32xf32> to vector<8x32xf32>
      %c0_49 = arith.constant 0 : index
      %c0_50 = arith.constant 0 : index
      %76 = vector.load %arg11[%c0_49, %c0_50] : memref<32x16xf32, #tpu.memory_space<vmem>>, vector<32x16xf32>
      %cst_51 = arith.constant dense<0.000000e+00> : vector<8x16xf32>
      %77 = tpu.matmul %75, %76, %cst_51 {dimension_numbers = #tpu.dot_dimension_numbers<[1], [0], [0], [1], [0, 0, 1, 1], [], []>} : vector<8x32xf32>, vector<32x16xf32>, vector<8x16xf32> -> vector<8x16xf32>
      %c0_52 = arith.constant 0 : index
      %c0_53 = arith.constant 0 : index
      %78 = vector.load %arg12[%c0_52, %c0_53] : memref<1x16xf32, #tpu.memory_space<vmem>>, vector<1x16xf32>
      %79 = vector.broadcast %78 : vector<1x16xf32> to vector<8x16xf32>
      %80 = arith.addf %77, %79 : vector<8x16xf32>
      %c0_54 = arith.constant 0 : index
      %c0_55 = arith.constant 0 : index
      %81 = vector.load %arg13[%c0_54, %c0_55] : memref<8x16xf32, #tpu.memory_space<vmem>>, vector<8x16xf32>
      tpu.vector_store %arg13[%c0_54, %c0_55], %80 {strides = array<i32>} : memref<8x16xf32, #tpu.memory_space<vmem>>, vector<8x16xf32>,
    } else {
    }
    return
  }
  func.func @transform_0(%arg0: i32) -> (i32, i32) {
    %c0_i32 = arith.constant 0 : i32
    %c0_i32_0 = arith.constant 0 : i32
    return %c0_i32, %arg0 : i32, i32
  }
  func.func @transform_1(%arg0: i32) -> (i32, i32) {
    %c0_i32 = arith.constant 0 : i32
    %c0_i32_0 = arith.constant 0 : i32
    return %c0_i32, %arg0 : i32, i32
  }
  func.func @transform_2(%arg0: i32) -> (i32, i32) {
    %c0_i32 = arith.constant 0 : i32
    %c0_i32_0 = arith.constant 0 : i32
    return %arg0, %c0_i32 : i32, i32
  }
  func.func @transform_3(%arg0: i32) -> (i32, i32) {
    %c0_i32 = arith.constant 0 : i32
    %c0_i32_0 = arith.constant 0 : i32
    %c0_i32_1 = arith.constant 0 : i32
    return %c0_i32, %c0_i32_0 : i32, i32
  }
  func.func @transform_4(%arg0: i32) -> (i32, i32) {
    %c0_i32 = arith.constant 0 : i32
    %c0_i32_0 = arith.constant 0 : i32
    return %arg0, %c0_i32 : i32, i32
  }
  func.func @transform_5(%arg0: i32) -> (i32, i32) {
    %c0_i32 = arith.constant 0 : i32
    %c0_i32_0 = arith.constant 0 : i32
    %c0_i32_1 = arith.constant 0 : i32
    return %c0_i32, %c0_i32_0 : i32, i32
  }
  func.func @transform_6(%arg0: i32) -> (i32, i32) {
    %c0_i32 = arith.constant 0 : i32
    %c0_i32_0 = arith.constant 0 : i32
    %c0_i32_1 = arith.constant 0 : i32
    return %c0_i32, %c0_i32_0 : i32, i32
  }
  func.func @transform_7(%arg0: i32) -> (i32, i32) {
    %c0_i32 = arith.constant 0 : i32
    %c0_i32_0 = arith.constant 0 : i32
    %c0_i32_1 = arith.constant 0 : i32
    return %c0_i32, %c0_i32_0 : i32, i32
  }
  func.func @transform_8(%arg0: i32) -> (i32, i32) {
    %c0_i32 = arith.constant 0 : i32
    %c0_i32_0 = arith.constant 0 : i32
    %c0_i32_1 = arith.constant 0 : i32
    return %c0_i32, %c0_i32_0 : i32, i32
  }
  func.func @transform_9(%arg0: i32) -> (i32, i32) {
    %c0_i32 = arith.constant 0 : i32
    %c0_i32_0 = arith.constant 0 : i32
    %c0_i32_1 = arith.constant 0 : i32
    return %c0_i32, %c0_i32_0 : i32, i32
  }
  func.func @transform_10(%arg0: i32) -> (i32, i32) {
    %c0_i32 = arith.constant 0 : i32
    %c0_i32_0 = arith.constant 0 : i32
    %c0_i32_1 = arith.constant 0 : i32
    return %c0_i32, %c0_i32_0 : i32, i32
  }
  func.func @transform_11(%arg0: i32) -> (i32, i32) {
    %c0_i32 = arith.constant 0 : i32
    %c0_i32_0 = arith.constant 0 : i32
    %c0_i32_1 = arith.constant 0 : i32
    return %c0_i32, %c0_i32_0 : i32, i32
  }
  func.func @transform_12(%arg0: i32) -> (i32, i32) {
    %c0_i32 = arith.constant 0 : i32
    %c0_i32_0 = arith.constant 0 : i32
    %c0_i32_1 = arith.constant 0 : i32
    return %c0_i32, %c0_i32_0 : i32, i32
  }
  func.func @transform_13(%arg0: i32) -> (i32, i32) {
    %c0_i32 = arith.constant 0 : i32
    %c0_i32_0 = arith.constant 0 : i32
    return %arg0, %c0_i32 : i32, i32
  }
  func.func @transform_14(%arg0: i32) -> (i32, i32) {
    %c0_i32 = arith.constant 0 : i32
    %c0_i32_0 = arith.constant 0 : i32
    %c0_i32_1 = arith.constant 0 : i32
    return %c0_i32, %c0_i32_0 : i32, i32
  }
}

</mosaic_0001>

<llo_original>
// kernel: _forward_impl.1
$region0: #{_forward_impl.1}
  #allocation0 [shape = 'u32[]', space=smem, size = 0x4, offset = 0x4, fixed_abs, tag = 'smem constant byte address 0x4 - core index']
  #allocation1 [shape = 'u32[72,128]{1,0:T(1,128)}', space=vmem, size = 0x9000, scoped, tag = 'internal scratch']
  #allocation2 [shape = 'f32[4,64]{1,0:T(4,128)}', space=vmem, size = 0x800, scoped, tag = 'scratch operand']
  #allocation3 [shape = 'f32[4,64]{1,0:T(4,128)}', space=vmem, size = 0x800, scoped, tag = 'scratch operand']
  %s0 = inlined_call_operand.vmem [shape: f32[2,1024], index: 0, kind: input, shape index: {}]
  %s1 = inlined_call_operand.vmem [shape: f32[2,1024], index: 1, kind: input, shape index: {}]
  %s2 = inlined_call_operand.vmem [shape: f32[1024,64], index: 2, kind: input, shape index: {}]
  %s3 = inlined_call_operand.vmem [shape: f32[1,64], index: 3, kind: input, shape index: {}]
  %s4 = inlined_call_operand.vmem [shape: f32[1024,64], index: 4, kind: input, shape index: {}, may-alias: {4,13}]
  %s5 = inlined_call_operand.vmem [shape: f32[1,64], index: 5, kind: input, shape index: {}, may-alias: {5,14}]
  %s6 = inlined_call_operand.vmem [shape: f32[64,32], index: 6, kind: input, shape index: {}]
  %s7 = inlined_call_operand.vmem [shape: f32[1,32], index: 7, kind: input, shape index: {}]
  %s8 = inlined_call_operand.vmem [shape: f32[1,32], index: 8, kind: input, shape index: {}]
  %s9 = inlined_call_operand.vmem [shape: f32[1,32], index: 9, kind: input, shape index: {}]
  %s10 = inlined_call_operand.vmem [shape: f32[32,16], index: 10, kind: input, shape index: {}]
  %s11 = inlined_call_operand.vmem [shape: f32[1,16], index: 11, kind: input, shape index: {}]
  %s12 = inlined_call_operand.hbm [shape: f32[8,16], index: 12, kind: output, shape index: {0}]
  %s13 = inlined_call_operand.vmem [shape: f32[1024,64], index: 13, kind: output, shape index: {1}, may-alias: {4,13}]
  %s14 = inlined_call_operand.vmem [shape: f32[1,64], index: 14, kind: output, shape index: {2}, may-alias: {5,14}]
  %15 = xla_tuple %s12, %s13, %s14
  %s16 = sld [smem:[#allocation0]]
  $region105: #{_forward_impl.1} parent=0
    _
  %s18 = ssub.s32 1, %s16
  %s19 = scalar_select 0, %s18, %s16
  $region1: #{_forward_impl.1} parent=0
    #allocation4 [shape = 'u8[4096]{0}', space=vmem, size = 0x1000, scoped, tag = 'output window, operand 0, single buffered']
    #allocation5 [shape = 's32[2]{0}', space=sflag, size = 0x8, scoped, tag = 'scoped memory for _forward_impl.1']
    %20 = vsyncpa [#allocation5], 0
    loop: start=0, step=1, limit=4
    $region2: #{_forward_impl.1} parent=1 // loop_pre_header
      _
    $region3: #{_forward_impl.1} parent=1 // loop_header
      %s22 = sphi 0, %s26
      %p23 = scmp.ge.s32.totalorder %s22, 4
      %s32 = sphi 0, %s34
      %s35 = sphi 0, %s32
      %s36 = sphi 0, %s35
      %s52 = sphi 0, %s36
      %s58 = sphi 0, %s60
      %s61 = sphi 0, %s58
      %s62 = sphi 0, %s61
      %s78 = sphi 0, %s62
      %s84 = sphi 0, %s86
      %s87 = sphi 0, %s84
      %s88 = sphi 0, %s87
      %s104 = sphi 0, %s88
      %s108 = sphi 0, %s108
      %s110 = sphi 0, %s108
      %s111 = sphi 0, %s110
      %s125 = sphi 0, %s111
      %s131 = sphi 0, %s133
      %s134 = sphi 0, %s131
      %s135 = sphi 0, %s134
      %s151 = sphi 0, %s135
      %s155 = sphi 0, %s155
      %s157 = sphi 0, %s155
      %s158 = sphi 0, %s157
      %s172 = sphi 0, %s158
      %s176 = sphi 0, %s176
      %s178 = sphi 0, %s176
      %s179 = sphi 0, %s178
      %s193 = sphi 0, %s179
      %s197 = sphi 0, %s197
      %s199 = sphi 0, %s197
      %s200 = sphi 0, %s199
      %s214 = sphi 0, %s200
      %s218 = sphi 0, %s218
      %s220 = sphi 0, %s218
      %s221 = sphi 0, %s220
      %s235 = sphi 0, %s221
      %s239 = sphi 0, %s239
      %s241 = sphi 0, %s239
      %s242 = sphi 0, %s241
      %s256 = sphi 0, %s242
      %s260 = sphi 0, %s260
      %s262 = sphi 0, %s260
      %s263 = sphi 0, %s262
      %s277 = sphi 0, %s263
      %s281 = sphi 0, %s281
      %s283 = sphi 0, %s281
      %s284 = sphi 0, %s283
      %s298 = sphi 0, %s284
      %s302 = sphi 0, %s302
      %s304 = sphi 0, %s302
      %s305 = sphi 0, %s304
      %s319 = sphi 0, %s305
      %s325 = sphi 0, %s327
      %s328 = sphi 0, %s325
      %s329 = sphi 0, %s328
      %s345 = sphi 0, %s329
      %s349 = sphi 0, %s349
      %s351 = sphi 0, %s349
      %s352 = sphi 0, %s351
      %s366 = sphi 0, %s352
    $region4: #{_forward_impl.1} parent=1 // loop_header_branch
      %25 = sbr.rel (%p23) target = $region8
    $region5: #{_forward_impl.1} parent=1 // loop_body
      %s27 = ssub.s32 %s22, 1
      %s28 = ssub.s32 %s22, 2
      %s29 = sadd.s32 %s22, 1
      %s30 = ssub.s32 %s22, %s29
      %p31 = scmp.eq.s32.totalorder %s30, 0
      %s33 = sadd.s32 %s32, 1
      %s34 = scalar_select %p31, %s32, %s33
      %p37 = pneg %p31
      %p38 = scmp.eq.s32.totalorder %s22, 1
      %p39 = por %p37, %p38
      %p40 = scmp.ne.s32.totalorder %s32, %s35
      %p41 = scmp.eq.s32.totalorder %s22, 0
      %p42 = por %p40, %p41
      %p43 = scmp.ne.s32.totalorder %s32, %s35
      %p44 = scmp.eq.s32.totalorder %s27, 1
      %p45 = por %p43, %p44
      %p46 = scmp.ne.s32.totalorder %s35, %s36
      %p47 = scmp.eq.s32.totalorder %s27, 0
      %p48 = por %p46, %p47
      %p49 = scmp.ne.s32.totalorder %s35, %s36
      %p50 = scmp.eq.s32.totalorder %s28, 1
      %p51 = por %p49, %p50
      %p53 = scmp.ne.s32.totalorder %s36, %s52
      %p54 = scmp.eq.s32.totalorder %s28, 0
      %p55 = por %p53, %p54
      %s56 = ssub.s32 %s22, %s29
      %p57 = scmp.eq.s32.totalorder %s56, 0
      %s59 = sadd.s32 %s58, 1
      %s60 = scalar_select %p57, %s58, %s59
      %p63 = pneg %p57
      %p64 = scmp.eq.s32.totalorder %s22, 1
      %p65 = por %p63, %p64
      %p66 = scmp.ne.s32.totalorder %s58, %s61
      %p67 = scmp.eq.s32.totalorder %s22, 0
      %p68 = por %p66, %p67
      %p69 = scmp.ne.s32.totalorder %s58, %s61
      %p70 = scmp.eq.s32.totalorder %s27, 1
      %p71 = por %p69, %p70
      %p72 = scmp.ne.s32.totalorder %s61, %s62
      %p73 = scmp.eq.s32.totalorder %s27, 0
      %p74 = por %p72, %p73
      %p75 = scmp.ne.s32.totalorder %s61, %s62
      %p76 = scmp.eq.s32.totalorder %s28, 1
      %p77 = por %p75, %p76
      %p79 = scmp.ne.s32.totalorder %s62, %s78
      %p80 = scmp.eq.s32.totalorder %s28, 0
      %p81 = por %p79, %p80
      %s82 = ssub.s32 %s22, %s29
      %p83 = scmp.eq.s32.totalorder %s82, 0
      %s85 = sadd.s32 %s84, 1
      %s86 = scalar_select %p83, %s84, %s85
      %p89 = pneg %p83
      %p90 = scmp.eq.s32.totalorder %s22, 1
      %p91 = por %p89, %p90
      %p92 = scmp.ne.s32.totalorder %s84, %s87
      %p93 = scmp.eq.s32.totalorder %s22, 0
      %p94 = por %p92, %p93
      %p95 = scmp.ne.s32.totalorder %s84, %s87
      %p96 = scmp.eq.s32.totalorder %s27, 1
      %p97 = por %p95, %p96
      %p98 = scmp.ne.s32.totalorder %s87, %s88
      %p99 = scmp.eq.s32.totalorder %s27, 0
      %p100 = por %p98, %p99
      %p101 = scmp.ne.s32.totalorder %s87, %s88
      %p102 = scmp.eq.s32.totalorder %s28, 1
      %p103 = por %p101, %p102
      %p105 = scmp.ne.s32.totalorder %s88, %s104
      %p106 = scmp.eq.s32.totalorder %s28, 0
      %p107 = por %p105, %p106
      %s109 = sadd.s32 %s108, 1
      %p112 = scmp.eq.s32.totalorder %s22, 1
      %p113 = scmp.ne.s32.totalorder %s108, %s110
      %p114 = scmp.eq.s32.totalorder %s22, 0
      %p115 = por %p113, %p114
      %p116 = scmp.ne.s32.totalorder %s108, %s110
      %p117 = scmp.eq.s32.totalorder %s27, 1
      %p118 = por %p116, %p117
      %p119 = scmp.ne.s32.totalorder %s110, %s111
      %p120 = scmp.eq.s32.totalorder %s27, 0
      %p121 = por %p119, %p120
      %p122 = scmp.ne.s32.totalorder %s110, %s111
      %p123 = scmp.eq.s32.totalorder %s28, 1
      %p124 = por %p122, %p123
      %p126 = scmp.ne.s32.totalorder %s111, %s125
      %p127 = scmp.eq.s32.totalorder %s28, 0
      %p128 = por %p126, %p127
      %s129 = ssub.s32 %s22, %s29
      %p130 = scmp.eq.s32.totalorder %s129, 0
      %s132 = sadd.s32 %s131, 1
      %s133 = scalar_select %p130, %s131, %s132
      %p136 = pneg %p130
      %p137 = scmp.eq.s32.totalorder %s22, 1
      %p138 = por %p136, %p137
      %p139 = scmp.ne.s32.totalorder %s131, %s134
      %p140 = scmp.eq.s32.totalorder %s22, 0
      %p141 = por %p139, %p140
      %p142 = scmp.ne.s32.totalorder %s131, %s134
      %p143 = scmp.eq.s32.totalorder %s27, 1
      %p144 = por %p142, %p143
      %p145 = scmp.ne.s32.totalorder %s134, %s135
      %p146 = scmp.eq.s32.totalorder %s27, 0
      %p147 = por %p145, %p146
      %p148 = scmp.ne.s32.totalorder %s134, %s135
      %p149 = scmp.eq.s32.totalorder %s28, 1
      %p150 = por %p148, %p149
      %p152 = scmp.ne.s32.totalorder %s135, %s151
      %p153 = scmp.eq.s32.totalorder %s28, 0
      %p154 = por %p152, %p153
      %s156 = sadd.s32 %s155, 1
      %p159 = scmp.eq.s32.totalorder %s22, 1
      %p160 = scmp.ne.s32.totalorder %s155, %s157
      %p161 = scmp.eq.s32.totalorder %s22, 0
      %p162 = por %p160, %p161
      %p163 = scmp.ne.s32.totalorder %s155, %s157
      %p164 = scmp.eq.s32.totalorder %s27, 1
      %p165 = por %p163, %p164
      %p166 = scmp.ne.s32.totalorder %s157, %s158
      %p167 = scmp.eq.s32.totalorder %s27, 0
      %p168 = por %p166, %p167
      %p169 = scmp.ne.s32.totalorder %s157, %s158
      %p170 = scmp.eq.s32.totalorder %s28, 1
      %p171 = por %p169, %p170
      %p173 = scmp.ne.s32.totalorder %s158, %s172
      %p174 = scmp.eq.s32.totalorder %s28, 0
      %p175 = por %p173, %p174
      %s177 = sadd.s32 %s176, 1
      %p180 = scmp.eq.s32.totalorder %s22, 1
      %p181 = scmp.ne.s32.totalorder %s176, %s178
      %p182 = scmp.eq.s32.totalorder %s22, 0
      %p183 = por %p181, %p182
      %p184 = scmp.ne.s32.totalorder %s176, %s178
      %p185 = scmp.eq.s32.totalorder %s27, 1
      %p186 = por %p184, %p185
      %p187 = scmp.ne.s32.totalorder %s178, %s179
      %p188 = scmp.eq.s32.totalorder %s27, 0
      %p189 = por %p187, %p188
      %p190 = scmp.ne.s32.totalorder %s178, %s179
      %p191 = scmp.eq.s32.totalorder %s28, 1
      %p192 = por %p190, %p191
      %p194 = scmp.ne.s32.totalorder %s179, %s193
      %p195 = scmp.eq.s32.totalorder %s28, 0
      %p196 = por %p194, %p195
      %s198 = sadd.s32 %s197, 1
      %p201 = scmp.eq.s32.totalorder %s22, 1
      %p202 = scmp.ne.s32.totalorder %s197, %s199
      %p203 = scmp.eq.s32.totalorder %s22, 0
      %p204 = por %p202, %p203
      %p205 = scmp.ne.s32.totalorder %s197, %s199
      %p206 = scmp.eq.s32.totalorder %s27, 1
      %p207 = por %p205, %p206
      %p208 = scmp.ne.s32.totalorder %s199, %s200
      %p209 = scmp.eq.s32.totalorder %s27, 0
      %p210 = por %p208, %p209
      %p211 = scmp.ne.s32.totalorder %s199, %s200
      %p212 = scmp.eq.s32.totalorder %s28, 1
      %p213 = por %p211, %p212
      %p215 = scmp.ne.s32.totalorder %s200, %s214
      %p216 = scmp.eq.s32.totalorder %s28, 0
      %p217 = por %p215, %p216
      %s219 = sadd.s32 %s218, 1
      %p222 = scmp.eq.s32.totalorder %s22, 1
      %p223 = scmp.ne.s32.totalorder %s218, %s220
      %p224 = scmp.eq.s32.totalorder %s22, 0
      %p225 = por %p223, %p224
      %p226 = scmp.ne.s32.totalorder %s218, %s220
      %p227 = scmp.eq.s32.totalorder %s27, 1
      %p228 = por %p226, %p227
      %p229 = scmp.ne.s32.totalorder %s220, %s221
      %p230 = scmp.eq.s32.totalorder %s27, 0
      %p231 = por %p229, %p230
      %p232 = scmp.ne.s32.totalorder %s220, %s221
      %p233 = scmp.eq.s32.totalorder %s28, 1
      %p234 = por %p232, %p233
      %p236 = scmp.ne.s32.totalorder %s221, %s235
      %p237 = scmp.eq.s32.totalorder %s28, 0
      %p238 = por %p236, %p237
      %s240 = sadd.s32 %s239, 1
      %p243 = scmp.eq.s32.totalorder %s22, 1
      %p244 = scmp.ne.s32.totalorder %s239, %s241
      %p245 = scmp.eq.s32.totalorder %s22, 0
      %p246 = por %p244, %p245
      %p247 = scmp.ne.s32.totalorder %s239, %s241
      %p248 = scmp.eq.s32.totalorder %s27, 1
      %p249 = por %p247, %p248
      %p250 = scmp.ne.s32.totalorder %s241, %s242
      %p251 = scmp.eq.s32.totalorder %s27, 0
      %p252 = por %p250, %p251
      %p253 = scmp.ne.s32.totalorder %s241, %s242
      %p254 = scmp.eq.s32.totalorder %s28, 1
      %p255 = por %p253, %p254
      %p257 = scmp.ne.s32.totalorder %s242, %s256
      %p258 = scmp.eq.s32.totalorder %s28, 0
      %p259 = por %p257, %p258
      %s261 = sadd.s32 %s260, 1
      %p264 = scmp.eq.s32.totalorder %s22, 1
      %p265 = scmp.ne.s32.totalorder %s260, %s262
      %p266 = scmp.eq.s32.totalorder %s22, 0
      %p267 = por %p265, %p266
      %p268 = scmp.ne.s32.totalorder %s260, %s262
      %p269 = scmp.eq.s32.totalorder %s27, 1
      %p270 = por %p268, %p269
      %p271 = scmp.ne.s32.totalorder %s262, %s263
      %p272 = scmp.eq.s32.totalorder %s27, 0
      %p273 = por %p271, %p272
      %p274 = scmp.ne.s32.totalorder %s262, %s263
      %p275 = scmp.eq.s32.totalorder %s28, 1
      %p276 = por %p274, %p275
      %p278 = scmp.ne.s32.totalorder %s263, %s277
      %p279 = scmp.eq.s32.totalorder %s28, 0
      %p280 = por %p278, %p279
      %s282 = sadd.s32 %s281, 1
      %p285 = scmp.eq.s32.totalorder %s22, 1
      %p286 = scmp.ne.s32.totalorder %s281, %s283
      %p287 = scmp.eq.s32.totalorder %s22, 0
      %p288 = por %p286, %p287
      %p289 = scmp.ne.s32.totalorder %s281, %s283
      %p290 = scmp.eq.s32.totalorder %s27, 1
      %p291 = por %p289, %p290
      %p292 = scmp.ne.s32.totalorder %s283, %s284
      %p293 = scmp.eq.s32.totalorder %s27, 0
      %p294 = por %p292, %p293
      %p295 = scmp.ne.s32.totalorder %s283, %s284
      %p296 = scmp.eq.s32.totalorder %s28, 1
      %p297 = por %p295, %p296
      %p299 = scmp.ne.s32.totalorder %s284, %s298
      %p300 = scmp.eq.s32.totalorder %s28, 0
      %p301 = por %p299, %p300
      %s303 = sadd.s32 %s302, 1
      %p306 = scmp.eq.s32.totalorder %s22, 1
      %p307 = scmp.ne.s32.totalorder %s302, %s304
      %p308 = scmp.eq.s32.totalorder %s22, 0
      %p309 = por %p307, %p308
      %p310 = scmp.ne.s32.totalorder %s302, %s304
      %p311 = scmp.eq.s32.totalorder %s27, 1
      %p312 = por %p310, %p311
      %p313 = scmp.ne.s32.totalorder %s304, %s305
      %p314 = scmp.eq.s32.totalorder %s27, 0
      %p315 = por %p313, %p314
      %p316 = scmp.ne.s32.totalorder %s304, %s305
      %p317 = scmp.eq.s32.totalorder %s28, 1
      %p318 = por %p316, %p317
      %p320 = scmp.ne.s32.totalorder %s305, %s319
      %p321 = scmp.eq.s32.totalorder %s28, 0
      %p322 = por %p320, %p321
      %s323 = ssub.s32 %s22, %s29
      %p324 = scmp.eq.s32.totalorder %s323, 0
      %s326 = sadd.s32 %s325, 1
      %s327 = scalar_select %p324, %s325, %s326
      %p330 = pneg %p324
      %p331 = scmp.eq.s32.totalorder %s22, 1
      %p332 = por %p330, %p331
      %p333 = scmp.ne.s32.totalorder %s325, %s328
      %p334 = scmp.eq.s32.totalorder %s22, 0
      %p335 = por %p333, %p334
      %p336 = scmp.ne.s32.totalorder %s325, %s328
      %p337 = scmp.eq.s32.totalorder %s27, 1
      %p338 = por %p336, %p337
      %p339 = scmp.ne.s32.totalorder %s328, %s329
      %p340 = scmp.eq.s32.totalorder %s27, 0
      %p341 = por %p339, %p340
      %p342 = scmp.ne.s32.totalorder %s328, %s329
      %p343 = scmp.eq.s32.totalorder %s28, 1
      %p344 = por %p342, %p343
      %p346 = scmp.ne.s32.totalorder %s329, %s345
      %p347 = scmp.eq.s32.totalorder %s28, 0
      %p348 = por %p346, %p347
      %s350 = sadd.s32 %s349, 1
      %p353 = scmp.eq.s32.totalorder %s22, 1
      %p354 = scmp.ne.s32.totalorder %s349, %s351
      %p355 = scmp.eq.s32.totalorder %s22, 0
      %p356 = por %p354, %p355
      %p357 = scmp.ne.s32.totalorder %s349, %s351
      %p358 = scmp.eq.s32.totalorder %s27, 1
      %p359 = por %p357, %p358
      %p360 = scmp.ne.s32.totalorder %s351, %s352
      %p361 = scmp.eq.s32.totalorder %s27, 0
      %p362 = por %p360, %p361
      %p363 = scmp.ne.s32.totalorder %s351, %s352
      %p364 = scmp.eq.s32.totalorder %s28, 1
      %p365 = por %p363, %p364
      %p367 = scmp.ne.s32.totalorder %s352, %s366
      %p368 = scmp.eq.s32.totalorder %s28, 0
      %p369 = por %p367, %p368
      %p370 = scmp.le.s32.totalorder 1, %s22
      %p371 = scmp.lt.s32.totalorder %s22, 3
      %p372 = pnand %p370, %p371
      %p373 = pneg %p372
      // Predicated region
      $region9: #{_forward_impl.1} parent=5 // pred_check
        _
      $region10: #{_forward_impl.1} parent=5 // pred_check_branch
        %375 = sbr.rel (%p372) target = $region12
      $region11: #{_forward_impl.1} parent=5 // pred_region
        %s376 = ssub.s32 %s22, 1
        // Predicated region
        $region13: #{_forward_impl.1} parent=11 // pred_check
          %p377 = pneg %p121
        $region14: #{_forward_impl.1} parent=11 // pred_check_branch
          %379 = sbr.rel (%p377) target = $region16
        $region15: #{_forward_impl.1} parent=11 // pred_region
          _
        $region16: #{_forward_impl.1} parent=11 // pred_fallthru
          _
        // Predicated region
        $region17: #{_forward_impl.1} parent=11 // pred_check
          %p380 = pneg %p168
        $region18: #{_forward_impl.1} parent=11 // pred_check_branch
          %382 = sbr.rel (%p380) target = $region20
        $region19: #{_forward_impl.1} parent=11 // pred_region
          _
        $region20: #{_forward_impl.1} parent=11 // pred_fallthru
          _
        // Predicated region
        $region21: #{_forward_impl.1} parent=11 // pred_check
          %p383 = pneg %p189
        $region22: #{_forward_impl.1} parent=11 // pred_check_branch
          %385 = sbr.rel (%p383) target = $region24
        $region23: #{_forward_impl.1} parent=11 // pred_region
          _
        $region24: #{_forward_impl.1} parent=11 // pred_fallthru
          _
        // Predicated region
        $region25: #{_forward_impl.1} parent=11 // pred_check
          %p386 = pneg %p210
        $region26: #{_forward_impl.1} parent=11 // pred_check_branch
          %388 = sbr.rel (%p386) target = $region28
        $region27: #{_forward_impl.1} parent=11 // pred_region
          _
        $region28: #{_forward_impl.1} parent=11 // pred_fallthru
          _
        // Predicated region
        $region29: #{_forward_impl.1} parent=11 // pred_check
          %p389 = pneg %p231
        $region30: #{_forward_impl.1} parent=11 // pred_check_branch
          %391 = sbr.rel (%p389) target = $region32
        $region31: #{_forward_impl.1} parent=11 // pred_region
          _
        $region32: #{_forward_impl.1} parent=11 // pred_fallthru
          _
        // Predicated region
        $region33: #{_forward_impl.1} parent=11 // pred_check
          %p392 = pneg %p252
        $region34: #{_forward_impl.1} parent=11 // pred_check_branch
          %394 = sbr.rel (%p392) target = $region36
        $region35: #{_forward_impl.1} parent=11 // pred_region
          _
        $region36: #{_forward_impl.1} parent=11 // pred_fallthru
          _
        // Predicated region
        $region37: #{_forward_impl.1} parent=11 // pred_check
          %p395 = pneg %p273
        $region38: #{_forward_impl.1} parent=11 // pred_check_branch
          %397 = sbr.rel (%p395) target = $region40
        $region39: #{_forward_impl.1} parent=11 // pred_region
          _
        $region40: #{_forward_impl.1} parent=11 // pred_fallthru
          _
        // Predicated region
        $region41: #{_forward_impl.1} parent=11 // pred_check
          %p398 = pneg %p294
        $region42: #{_forward_impl.1} parent=11 // pred_check_branch
          %400 = sbr.rel (%p398) target = $region44
        $region43: #{_forward_impl.1} parent=11 // pred_region
          _
        $region44: #{_forward_impl.1} parent=11 // pred_fallthru
          _
      $region12: #{_forward_impl.1} parent=5 // pred_fallthru
        _
      %p401 = scmp.lt.s32.totalorder %s22, 2
      // Predicated region
      $region45: #{_forward_impl.1} parent=5 // pred_check
        %p402 = pneg %p401
      $region46: #{_forward_impl.1} parent=5 // pred_check_branch
        %404 = sbr.rel (%p402) target = $region48
      $region47: #{_forward_impl.1} parent=5 // pred_region
        // Predicated region
        $region49: #{_forward_impl.1} parent=47 // pred_check
          %p405 = pneg %p42
        $region50: #{_forward_impl.1} parent=47 // pred_check_branch
          %407 = sbr.rel (%p405) target = $region52
        $region51: #{_forward_impl.1} parent=47 // pred_region
          %s408 = smul.u32 4, %s22
          %p409 = scmp.lt.s32.totalorder %s408, 7
          %s410 = scalar_select %p409, %s408, 7
          %s411 = smul.addr %s410, 2
          %s412 = scalar_lea.vmem %s0, %s411
          %s413 = smul.u32 4, %s22
        $region52: #{_forward_impl.1} parent=47 // pred_fallthru
          _
        // Predicated region
        $region53: #{_forward_impl.1} parent=47 // pred_check
          %p414 = pneg %p68
        $region54: #{_forward_impl.1} parent=47 // pred_check_branch
          %416 = sbr.rel (%p414) target = $region56
        $region55: #{_forward_impl.1} parent=47 // pred_region
          %s417 = smul.u32 4, %s22
          %p418 = scmp.lt.s32.totalorder %s417, 7
          %s419 = scalar_select %p418, %s417, 7
          %s420 = smul.addr %s419, 2
          %s421 = scalar_lea.vmem %s1, %s420
          %s422 = smul.u32 4, %s22
        $region56: #{_forward_impl.1} parent=47 // pred_fallthru
          _
        // Predicated region
        $region57: #{_forward_impl.1} parent=47 // pred_check
          %p423 = pneg %p94
        $region58: #{_forward_impl.1} parent=47 // pred_check_branch
          %425 = sbr.rel (%p423) target = $region60
        $region59: #{_forward_impl.1} parent=47 // pred_region
          %s426 = smul.u32 64, %s22
          %p427 = scmp.lt.s32.totalorder %s426, 127
          %s428 = scalar_select %p427, %s426, 127
          %s429 = smul.addr %s428, 8
          %s430 = scalar_lea.vmem %s2, %s429
          %s431 = smul.u32 64, %s22
        $region60: #{_forward_impl.1} parent=47 // pred_fallthru
          _
        // Predicated region
        $region61: #{_forward_impl.1} parent=47 // pred_check
          %p432 = pneg %p141
        $region62: #{_forward_impl.1} parent=47 // pred_check_branch
          %434 = sbr.rel (%p432) target = $region64
        $region63: #{_forward_impl.1} parent=47 // pred_region
          %s435 = smul.u32 64, %s22
          %p436 = scmp.lt.s32.totalorder %s435, 127
          %s437 = scalar_select %p436, %s435, 127
          %s438 = smul.addr %s437, 8
          %s439 = scalar_lea.vmem %s4, %s438
          %s440 = smul.u32 64, %s22
        $region64: #{_forward_impl.1} parent=47 // pred_fallthru
          _
      $region48: #{_forward_impl.1} parent=5 // pred_fallthru
        _
      %p441 = scmp.le.s32.totalorder 1, %s22
      %p442 = scmp.lt.s32.totalorder %s22, 3
      %p443 = pnand %p441, %p442
      %p444 = pneg %p443
      // Predicated region
      $region65: #{_forward_impl.1} parent=5 // pred_check
        _
      $region66: #{_forward_impl.1} parent=5 // pred_check_branch
        %446 = sbr.rel (%p443) target = $region68
      $region67: #{_forward_impl.1} parent=5 // pred_region
        %s447 = ssub.s32 %s22, 1
        %s448 = smul.u32 4, %s27
        %p449 = scmp.lt.s32.totalorder %s448, 7
        %s450 = scalar_select %p449, %s448, 7
        %s451 = smul.addr %s450, 2
        %s452 = scalar_lea.vmem %s0, %s451
        %p453 = pneg %p48
        %p454 = pneg %p45
        %s455 = smul.u32 4, %s27
        %p456 = scmp.lt.s32.totalorder %s455, 7
        %s457 = scalar_select %p456, %s455, 7
        %s458 = smul.addr %s457, 2
        %s459 = scalar_lea.vmem %s1, %s458
        %p460 = pneg %p74
        %p461 = pneg %p71
        %s462 = smul.u32 64, %s27
        %p463 = scmp.lt.s32.totalorder %s462, 127
        %s464 = scalar_select %p463, %s462, 127
        %s465 = smul.addr %s464, 8
        %s466 = scalar_lea.vmem %s2, %s465
        %p467 = pneg %p100
        %p468 = pneg %p97
        %p469 = pneg %p121
        %p470 = pneg %p118
        %s471 = smul.u32 64, %s27
        %p472 = scmp.lt.s32.totalorder %s471, 127
        %s473 = scalar_select %p472, %s471, 127
        %s474 = smul.addr %s473, 8
        %s475 = scalar_lea.vmem %s4, %s474
        %p476 = pneg %p147
        %p477 = pneg %p144
        %p478 = pneg %p168
        %p479 = pneg %p165
        %p480 = pneg %p189
        %p481 = pneg %p186
        %p482 = pneg %p210
        %p483 = pneg %p207
        %p484 = pneg %p231
        %p485 = pneg %p228
        %p486 = pneg %p252
        %p487 = pneg %p249
        %p488 = pneg %p273
        %p489 = pneg %p270
        %p490 = pneg %p294
        %p491 = pneg %p291
        %p492 = pneg %p315
        %p493 = pneg %p312
        %p494 = pneg %p341
        %p495 = pneg %p338
        %s496 = smul.u32 64, %s27
        %p497 = scmp.lt.s32.totalorder %s496, 127
        %s498 = scalar_select %p497, %s496, 127
        %s499 = smul.addr %s498, 8
        %s500 = scalar_lea.vmem %s13, %s499
        %p501 = pneg %p362
        %p502 = pneg %p359
        %s503 = smul.u32 4, %s27
        %p504 = scmp.lt.s32.totalorder %s503, 7
        %s505 = scalar_select %p504, %s503, 7
        %s506 = smul.addr %s505, 2
        %s507 = scalar_lea.vmem %s0, %s506
        %s508 = smul.u32 4, %s27
        %s509 = smul.u32 4, %s27
        %p510 = scmp.lt.s32.totalorder %s509, 7
        %s511 = scalar_select %p510, %s509, 7
        %s512 = smul.addr %s511, 2
        %s513 = scalar_lea.vmem %s1, %s512
        %s514 = smul.u32 4, %s27
        %s515 = smul.u32 64, %s27
        %p516 = scmp.lt.s32.totalorder %s515, 127
        %s517 = scalar_select %p516, %s515, 127
        %s518 = smul.addr %s517, 8
        %s519 = scalar_lea.vmem %s2, %s518
        %s520 = smul.u32 64, %s27
        %s521 = smul.u32 64, %s27
        %p522 = scmp.lt.s32.totalorder %s521, 127
        %s523 = scalar_select %p522, %s521, 127
        %s524 = smul.addr %s523, 8
        %s525 = scalar_lea.vmem %s4, %s524
        %s526 = smul.u32 64, %s27
        %s527 = smul.u32 64, %s27
        %p528 = scmp.lt.s32.totalorder %s527, 127
        %s529 = scalar_select %p528, %s527, 127
        %s530 = smul.addr %s529, 8
        %s531 = scalar_lea.vmem %s13, %s530
        %s532 = smul.u32 64, %s27
        %p533 = scmp.eq.s32.totalorder %s27, 0
        // Predicated region
        $region69: #{_forward_impl.1} parent=67 // pred_check
          %p534 = pneg %p533
        $region70: #{_forward_impl.1} parent=67 // pred_check_branch
          %536 = sbr.rel (%p534) target = $region72
        $region71: #{_forward_impl.1} parent=67 // pred_region
          %vm537 = vcmask 519168
          %538 = vst.msk [vmem:[#allocation2] sm:$0xf] %vm537, 0.0
          %539 = vst.msk [vmem:[#allocation3] sm:$0xf] %vm537, 0.0
          %v540 = vld [vmem:[%s5] sm:$0x1]
          %v541 = vmul.f32 %v540, 0.999
          %v542 = vld [vmem:[%s3] sm:$0x1]
          %v543 = vmul.f32 %v542, 0.001
          %v544 = vadd.f32 %v541, %v543
          %vm545 = vcmask 516096
          %546 = vst.msk [vmem:[%s14] sm:$0x1] %vm545, %v544
        $region72: #{_forward_impl.1} parent=67 // pred_fallthru
          _
        %v547 = vld [vmem:[%s525] sm:$0xff]
        %v548 = vld [vmem:[%s525 + $0x8] sm:$0xff]
        %v549 = vld [vmem:[%s525 + $0x10] sm:$0xff]
        %v550 = vld [vmem:[%s525 + $0x18] sm:$0xff]
        %v551 = vld [vmem:[%s525 + $0x20] sm:$0xff]
        %v552 = vld [vmem:[%s525 + $0x28] sm:$0xff]
        %v553 = vld [vmem:[%s525 + $0x30] sm:$0xff]
        %v554 = vld [vmem:[%s525 + $0x38] sm:$0xff]
        %v555 = vld [vmem:[%s525 + $0x40] sm:$0xff]
        %v556 = vld [vmem:[%s525 + $0x48] sm:$0xff]
        %v557 = vld [vmem:[%s525 + $0x50] sm:$0xff]
        %v558 = vld [vmem:[%s525 + $0x58] sm:$0xff]
        %v559 = vld [vmem:[%s525 + $0x60] sm:$0xff]
        %v560 = vld [vmem:[%s525 + $0x68] sm:$0xff]
        %v561 = vld [vmem:[%s525 + $0x70] sm:$0xff]
        %v562 = vld [vmem:[%s525 + $0x78] sm:$0xff]
        %v563 = vld [vmem:[%s525 + $0x80] sm:$0xff]
        %v564 = vld [vmem:[%s525 + $0x88] sm:$0xff]
        %v565 = vld [vmem:[%s525 + $0x90] sm:$0xff]
        %v566 = vld [vmem:[%s525 + $0x98] sm:$0xff]
        %v567 = vld [vmem:[%s525 + $0xa0] sm:$0xff]
        %v568 = vld [vmem:[%s525 + $0xa8] sm:$0xff]
        %v569 = vld [vmem:[%s525 + $0xb0] sm:$0xff]
        %v570 = vld [vmem:[%s525 + $0xb8] sm:$0xff]
        %v571 = vld [vmem:[%s525 + $0xc0] sm:$0xff]
        %v572 = vld [vmem:[%s525 + $0xc8] sm:$0xff]
        %v573 = vld [vmem:[%s525 + $0xd0] sm:$0xff]
        %v574 = vld [vmem:[%s525 + $0xd8] sm:$0xff]
        %v575 = vld [vmem:[%s525 + $0xe0] sm:$0xff]
        %v576 = vld [vmem:[%s525 + $0xe8] sm:$0xff]
        %v577 = vld [vmem:[%s525 + $0xf0] sm:$0xff]
        %v578 = vld [vmem:[%s525 + $0xf8] sm:$0xff]
        %v579 = vld [vmem:[%s525 + $0x100] sm:$0xff]
        %v580 = vld [vmem:[%s525 + $0x108] sm:$0xff]
        %v581 = vld [vmem:[%s525 + $0x110] sm:$0xff]
        %v582 = vld [vmem:[%s525 + $0x118] sm:$0xff]
        %v583 = vld [vmem:[%s525 + $0x120] sm:$0xff]
        %v584 = vld [vmem:[%s525 + $0x128] sm:$0xff]
        %v585 = vld [vmem:[%s525 + $0x130] sm:$0xff]
        %v586 = vld [vmem:[%s525 + $0x138] sm:$0xff]
        %v587 = vld [vmem:[%s525 + $0x140] sm:$0xff]
        %v588 = vld [vmem:[%s525 + $0x148] sm:$0xff]
        %v589 = vld [vmem:[%s525 + $0x150] sm:$0xff]
        %v590 = vld [vmem:[%s525 + $0x158] sm:$0xff]
        %v591 = vld [vmem:[%s525 + $0x160] sm:$0xff]
        %v592 = vld [vmem:[%s525 + $0x168] sm:$0xff]
        %v593 = vld [vmem:[%s525 + $0x170] sm:$0xff]
        %v594 = vld [vmem:[%s525 + $0x178] sm:$0xff]
        %v595 = vld [vmem:[%s525 + $0x180] sm:$0xff]
        %v596 = vld [vmem:[%s525 + $0x188] sm:$0xff]
        %v597 = vld [vmem:[%s525 + $0x190] sm:$0xff]
        %v598 = vld [vmem:[%s525 + $0x198] sm:$0xff]
        %v599 = vld [vmem:[%s525 + $0x1a0] sm:$0xff]
        %v600 = vld [vmem:[%s525 + $0x1a8] sm:$0xff]
        %v601 = vld [vmem:[%s525 + $0x1b0] sm:$0xff]
        %v602 = vld [vmem:[%s525 + $0x1b8] sm:$0xff]
        %v603 = vld [vmem:[%s525 + $0x1c0] sm:$0xff]
        %v604 = vld [vmem:[%s525 + $0x1c8] sm:$0xff]
        %v605 = vld [vmem:[%s525 + $0x1d0] sm:$0xff]
        %v606 = vld [vmem:[%s525 + $0x1d8] sm:$0xff]
        %v607 = vld [vmem:[%s525 + $0x1e0] sm:$0xff]
        %v608 = vld [vmem:[%s525 + $0x1e8] sm:$0xff]
        %v609 = vld [vmem:[%s525 + $0x1f0] sm:$0xff]
        %v610 = vld [vmem:[%s525 + $0x1f8] sm:$0xff]
        %v611 = vmul.f32 %v547, 0.999
        %v612 = vmul.f32 %v548, 0.999
        %v613 = vmul.f32 %v549, 0.999
        %v614 = vmul.f32 %v550, 0.999
        %v615 = vmul.f32 %v551, 0.999
        %v616 = vmul.f32 %v552, 0.999
        %v617 = vmul.f32 %v553, 0.999
        %v618 = vmul.f32 %v554, 0.999
        %v619 = vmul.f32 %v555, 0.999
        %v620 = vmul.f32 %v556, 0.999
        %v621 = vmul.f32 %v557, 0.999
        %v622 = vmul.f32 %v558, 0.999
        %v623 = vmul.f32 %v559, 0.999
        %v624 = vmul.f32 %v560, 0.999
        %v625 = vmul.f32 %v561, 0.999
        %v626 = vmul.f32 %v562, 0.999
        %v627 = vmul.f32 %v563, 0.999
        %v628 = vmul.f32 %v564, 0.999
        %v629 = vmul.f32 %v565, 0.999
        %v630 = vmul.f32 %v566, 0.999
        %v631 = vmul.f32 %v567, 0.999
        %v632 = vmul.f32 %v568, 0.999
        %v633 = vmul.f32 %v569, 0.999
        %v634 = vmul.f32 %v570, 0.999
        %v635 = vmul.f32 %v571, 0.999
        %v636 = vmul.f32 %v572, 0.999
        %v637 = vmul.f32 %v573, 0.999
        %v638 = vmul.f32 %v574, 0.999
        %v639 = vmul.f32 %v575, 0.999
        %v640 = vmul.f32 %v576, 0.999
        %v641 = vmul.f32 %v577, 0.999
        %v642 = vmul.f32 %v578, 0.999
        %v643 = vmul.f32 %v579, 0.999
        %v644 = vmul.f32 %v580, 0.999
        %v645 = vmul.f32 %v581, 0.999
        %v646 = vmul.f32 %v582, 0.999
        %v647 = vmul.f32 %v583, 0.999
        %v648 = vmul.f32 %v584, 0.999
        %v649 = vmul.f32 %v585, 0.999
        %v650 = vmul.f32 %v586, 0.999
        %v651 = vmul.f32 %v587, 0.999
        %v652 = vmul.f32 %v588, 0.999
        %v653 = vmul.f32 %v589, 0.999
        %v654 = vmul.f32 %v590, 0.999
        %v655 = vmul.f32 %v591, 0.999
        %v656 = vmul.f32 %v592, 0.999
        %v657 = vmul.f32 %v593, 0.999
        %v658 = vmul.f32 %v594, 0.999
        %v659 = vmul.f32 %v595, 0.999
        %v660 = vmul.f32 %v596, 0.999
        %v661 = vmul.f32 %v597, 0.999
        %v662 = vmul.f32 %v598, 0.999
        %v663 = vmul.f32 %v599, 0.999
        %v664 = vmul.f32 %v600, 0.999
        %v665 = vmul.f32 %v601, 0.999
        %v666 = vmul.f32 %v602, 0.999
        %v667 = vmul.f32 %v603, 0.999
        %v668 = vmul.f32 %v604, 0.999
        %v669 = vmul.f32 %v605, 0.999
        %v670 = vmul.f32 %v606, 0.999
        %v671 = vmul.f32 %v607, 0.999
        %v672 = vmul.f32 %v608, 0.999
        %v673 = vmul.f32 %v609, 0.999
        %v674 = vmul.f32 %v610, 0.999
        %v675 = vld [vmem:[%s519] sm:$0xff]
        %v676 = vld [vmem:[%s519 + $0x8] sm:$0xff]
        %v677 = vld [vmem:[%s519 + $0x10] sm:$0xff]
        %v678 = vld [vmem:[%s519 + $0x18] sm:$0xff]
        %v679 = vld [vmem:[%s519 + $0x20] sm:$0xff]
        %v680 = vld [vmem:[%s519 + $0x28] sm:$0xff]
        %v681 = vld [vmem:[%s519 + $0x30] sm:$0xff]
        %v682 = vld [vmem:[%s519 + $0x38] sm:$0xff]
        %v683 = vld [vmem:[%s519 + $0x40] sm:$0xff]
        %v684 = vld [vmem:[%s519 + $0x48] sm:$0xff]
        %v685 = vld [vmem:[%s519 + $0x50] sm:$0xff]
        %v686 = vld [vmem:[%s519 + $0x58] sm:$0xff]
        %v687 = vld [vmem:[%s519 + $0x60] sm:$0xff]
        %v688 = vld [vmem:[%s519 + $0x68] sm:$0xff]
        %v689 = vld [vmem:[%s519 + $0x70] sm:$0xff]
        %v690 = vld [vmem:[%s519 + $0x78] sm:$0xff]
        %v691 = vld [vmem:[%s519 + $0x80] sm:$0xff]
        %v692 = vld [vmem:[%s519 + $0x88] sm:$0xff]
        %v693 = vld [vmem:[%s519 + $0x90] sm:$0xff]
        %v694 = vld [vmem:[%s519 + $0x98] sm:$0xff]
        %v695 = vld [vmem:[%s519 + $0xa0] sm:$0xff]
        %v696 = vld [vmem:[%s519 + $0xa8] sm:$0xff]
        %v697 = vld [vmem:[%s519 + $0xb0] sm:$0xff]
        %v698 = vld [vmem:[%s519 + $0xb8] sm:$0xff]
        %v699 = vld [vmem:[%s519 + $0xc0] sm:$0xff]
        %v700 = vld [vmem:[%s519 + $0xc8] sm:$0xff]
        %v701 = vld [vmem:[%s519 + $0xd0] sm:$0xff]
        %v702 = vld [vmem:[%s519 + $0xd8] sm:$0xff]
        %v703 = vld [vmem:[%s519 + $0xe0] sm:$0xff]
        %v704 = vld [vmem:[%s519 + $0xe8] sm:$0xff]
        %v705 = vld [vmem:[%s519 + $0xf0] sm:$0xff]
        %v706 = vld [vmem:[%s519 + $0xf8] sm:$0xff]
        %v707 = vld [vmem:[%s519 + $0x100] sm:$0xff]
        %v708 = vld [vmem:[%s519 + $0x108] sm:$0xff]
        %v709 = vld [vmem:[%s519 + $0x110] sm:$0xff]
        %v710 = vld [vmem:[%s519 + $0x118] sm:$0xff]
        %v711 = vld [vmem:[%s519 + $0x120] sm:$0xff]
        %v712 = vld [vmem:[%s519 + $0x128] sm:$0xff]
        %v713 = vld [vmem:[%s519 + $0x130] sm:$0xff]
        %v714 = vld [vmem:[%s519 + $0x138] sm:$0xff]
        %v715 = vld [vmem:[%s519 + $0x140] sm:$0xff]
        %v716 = vld [vmem:[%s519 + $0x148] sm:$0xff]
        %v717 = vld [vmem:[%s519 + $0x150] sm:$0xff]
        %v718 = vld [vmem:[%s519 + $0x158] sm:$0xff]
        %v719 = vld [vmem:[%s519 + $0x160] sm:$0xff]
        %v720 = vld [vmem:[%s519 + $0x168] sm:$0xff]
        %v721 = vld [vmem:[%s519 + $0x170] sm:$0xff]
        %v722 = vld [vmem:[%s519 + $0x178] sm:$0xff]
        %v723 = vld [vmem:[%s519 + $0x180] sm:$0xff]
        %v724 = vld [vmem:[%s519 + $0x188] sm:$0xff]
        %v725 = vld [vmem:[%s519 + $0x190] sm:$0xff]
        %v726 = vld [vmem:[%s519 + $0x198] sm:$0xff]
        %v727 = vld [vmem:[%s519 + $0x1a0] sm:$0xff]
        %v728 = vld [vmem:[%s519 + $0x1a8] sm:$0xff]
        %v729 = vld [vmem:[%s519 + $0x1b0] sm:$0xff]
        %v730 = vld [vmem:[%s519 + $0x1b8] sm:$0xff]
        %v731 = vld [vmem:[%s519 + $0x1c0] sm:$0xff]
        %v732 = vld [vmem:[%s519 + $0x1c8] sm:$0xff]
        %v733 = vld [vmem:[%s519 + $0x1d0] sm:$0xff]
        %v734 = vld [vmem:[%s519 + $0x1d8] sm:$0xff]
        %v735 = vld [vmem:[%s519 + $0x1e0] sm:$0xff]
        %v736 = vld [vmem:[%s519 + $0x1e8] sm:$0xff]
        %v737 = vld [vmem:[%s519 + $0x1f0] sm:$0xff]
        %v738 = vld [vmem:[%s519 + $0x1f8] sm:$0xff]
        %v739 = vmul.f32 %v675, 0.001
        %v740 = vmul.f32 %v676, 0.001
        %v741 = vmul.f32 %v677, 0.001
        %v742 = vmul.f32 %v678, 0.001
        %v743 = vmul.f32 %v679, 0.001
        %v744 = vmul.f32 %v680, 0.001
        %v745 = vmul.f32 %v681, 0.001
        %v746 = vmul.f32 %v682, 0.001
        %v747 = vmul.f32 %v683, 0.001
        %v748 = vmul.f32 %v684, 0.001
        %v749 = vmul.f32 %v685, 0.001
        %v750 = vmul.f32 %v686, 0.001
        %v751 = vmul.f32 %v687, 0.001
        %v752 = vmul.f32 %v688, 0.001
        %v753 = vmul.f32 %v689, 0.001
        %v754 = vmul.f32 %v690, 0.001
        %v755 = vmul.f32 %v691, 0.001
        %v756 = vmul.f32 %v692, 0.001
        %v757 = vmul.f32 %v693, 0.001
        %v758 = vmul.f32 %v694, 0.001
        %v759 = vmul.f32 %v695, 0.001
        %v760 = vmul.f32 %v696, 0.001
        %v761 = vmul.f32 %v697, 0.001
        %v762 = vmul.f32 %v698, 0.001
        %v763 = vmul.f32 %v699, 0.001
        %v764 = vmul.f32 %v700, 0.001
        %v765 = vmul.f32 %v701, 0.001
        %v766 = vmul.f32 %v702, 0.001
        %v767 = vmul.f32 %v703, 0.001
        %v768 = vmul.f32 %v704, 0.001
        %v769 = vmul.f32 %v705, 0.001
        %v770 = vmul.f32 %v706, 0.001
        %v771 = vmul.f32 %v707, 0.001
        %v772 = vmul.f32 %v708, 0.001
        %v773 = vmul.f32 %v709, 0.001
        %v774 = vmul.f32 %v710, 0.001
        %v775 = vmul.f32 %v711, 0.001
        %v776 = vmul.f32 %v712, 0.001
        %v777 = vmul.f32 %v713, 0.001
        %v778 = vmul.f32 %v714, 0.001
        %v779 = vmul.f32 %v715, 0.001
        %v780 = vmul.f32 %v716, 0.001
        %v781 = vmul.f32 %v717, 0.001
        %v782 = vmul.f32 %v718, 0.001
        %v783 = vmul.f32 %v719, 0.001
        %v784 = vmul.f32 %v720, 0.001
        %v785 = vmul.f32 %v721, 0.001
        %v786 = vmul.f32 %v722, 0.001
        %v787 = vmul.f32 %v723, 0.001
        %v788 = vmul.f32 %v724, 0.001
        %v789 = vmul.f32 %v725, 0.001
        %v790 = vmul.f32 %v726, 0.001
        %v791 = vmul.f32 %v727, 0.001
        %v792 = vmul.f32 %v728, 0.001
        %v793 = vmul.f32 %v729, 0.001
        %v794 = vmul.f32 %v730, 0.001
        %v795 = vmul.f32 %v731, 0.001
        %v796 = vmul.f32 %v732, 0.001
        %v797 = vmul.f32 %v733, 0.001
        %v798 = vmul.f32 %v734, 0.001
        %v799 = vmul.f32 %v735, 0.001
        %v800 = vmul.f32 %v736, 0.001
        %v801 = vmul.f32 %v737, 0.001
        %v802 = vmul.f32 %v738, 0.001
        %v803 = vadd.f32 %v611, %v739
        %v804 = vadd.f32 %v612, %v740
        %v805 = vadd.f32 %v613, %v741
        %v806 = vadd.f32 %v614, %v742
        %v807 = vadd.f32 %v615, %v743
        %v808 = vadd.f32 %v616, %v744
        %v809 = vadd.f32 %v617, %v745
        %v810 = vadd.f32 %v618, %v746
        %v811 = vadd.f32 %v619, %v747
        %v812 = vadd.f32 %v620, %v748
        %v813 = vadd.f32 %v621, %v749
        %v814 = vadd.f32 %v622, %v750
        %v815 = vadd.f32 %v623, %v751
        %v816 = vadd.f32 %v624, %v752
        %v817 = vadd.f32 %v625, %v753
        %v818 = vadd.f32 %v626, %v754
        %v819 = vadd.f32 %v627, %v755
        %v820 = vadd.f32 %v628, %v756
        %v821 = vadd.f32 %v629, %v757
        %v822 = vadd.f32 %v630, %v758
        %v823 = vadd.f32 %v631, %v759
        %v824 = vadd.f32 %v632, %v760
        %v825 = vadd.f32 %v633, %v761
        %v826 = vadd.f32 %v634, %v762
        %v827 = vadd.f32 %v635, %v763
        %v828 = vadd.f32 %v636, %v764
        %v829 = vadd.f32 %v637, %v765
        %v830 = vadd.f32 %v638, %v766
        %v831 = vadd.f32 %v639, %v767
        %v832 = vadd.f32 %v640, %v768
        %v833 = vadd.f32 %v641, %v769
        %v834 = vadd.f32 %v642, %v770
        %v835 = vadd.f32 %v643, %v771
        %v836 = vadd.f32 %v644, %v772
        %v837 = vadd.f32 %v645, %v773
        %v838 = vadd.f32 %v646, %v774
        %v839 = vadd.f32 %v647, %v775
        %v840 = vadd.f32 %v648, %v776
        %v841 = vadd.f32 %v649, %v777
        %v842 = vadd.f32 %v650, %v778
        %v843 = vadd.f32 %v651, %v779
        %v844 = vadd.f32 %v652, %v780
        %v845 = vadd.f32 %v653, %v781
        %v846 = vadd.f32 %v654, %v782
        %v847 = vadd.f32 %v655, %v783
        %v848 = vadd.f32 %v656, %v784
        %v849 = vadd.f32 %v657, %v785
        %v850 = vadd.f32 %v658, %v786
        %v851 = vadd.f32 %v659, %v787
        %v852 = vadd.f32 %v660, %v788
        %v853 = vadd.f32 %v661, %v789
        %v854 = vadd.f32 %v662, %v790
        %v855 = vadd.f32 %v663, %v791
        %v856 = vadd.f32 %v664, %v792
        %v857 = vadd.f32 %v665, %v793
        %v858 = vadd.f32 %v666, %v794
        %v859 = vadd.f32 %v667, %v795
        %v860 = vadd.f32 %v668, %v796
        %v861 = vadd.f32 %v669, %v797
        %v862 = vadd.f32 %v670, %v798
        %v863 = vadd.f32 %v671, %v799
        %v864 = vadd.f32 %v672, %v800
        %v865 = vadd.f32 %v673, %v801
        %v866 = vadd.f32 %v674, %v802
        %vm867 = vcmask 523264
        %868 = vst.msk [vmem:[%s531] sm:$0xff] %vm867, %v803
        %869 = vst.msk [vmem:[%s531 + $0x8] sm:$0xff] %vm867, %v804
        %870 = vst.msk [vmem:[%s531 + $0x10] sm:$0xff] %vm867, %v805
        %871 = vst.msk [vmem:[%s531 + $0x18] sm:$0xff] %vm867, %v806
        %872 = vst.msk [vmem:[%s531 + $0x20] sm:$0xff] %vm867, %v807
        %873 = vst.msk [vmem:[%s531 + $0x28] sm:$0xff] %vm867, %v808
        %874 = vst.msk [vmem:[%s531 + $0x30] sm:$0xff] %vm867, %v809
        %875 = vst.msk [vmem:[%s531 + $0x38] sm:$0xff] %vm867, %v810
        %876 = vst.msk [vmem:[%s531 + $0x40] sm:$0xff] %vm867, %v811
        %877 = vst.msk [vmem:[%s531 + $0x48] sm:$0xff] %vm867, %v812
        %878 = vst.msk [vmem:[%s531 + $0x50] sm:$0xff] %vm867, %v813
        %879 = vst.msk [vmem:[%s531 + $0x58] sm:$0xff] %vm867, %v814
        %880 = vst.msk [vmem:[%s531 + $0x60] sm:$0xff] %vm867, %v815
        %881 = vst.msk [vmem:[%s531 + $0x68] sm:$0xff] %vm867, %v816
        %882 = vst.msk [vmem:[%s531 + $0x70] sm:$0xff] %vm867, %v817
        %883 = vst.msk [vmem:[%s531 + $0x78] sm:$0xff] %vm867, %v818
        %884 = vst.msk [vmem:[%s531 + $0x80] sm:$0xff] %vm867, %v819
        %885 = vst.msk [vmem:[%s531 + $0x88] sm:$0xff] %vm867, %v820
        %886 = vst.msk [vmem:[%s531 + $0x90] sm:$0xff] %vm867, %v821
        %887 = vst.msk [vmem:[%s531 + $0x98] sm:$0xff] %vm867, %v822
        %888 = vst.msk [vmem:[%s531 + $0xa0] sm:$0xff] %vm867, %v823
        %889 = vst.msk [vmem:[%s531 + $0xa8] sm:$0xff] %vm867, %v824
        %890 = vst.msk [vmem:[%s531 + $0xb0] sm:$0xff] %vm867, %v825
        %891 = vst.msk [vmem:[%s531 + $0xb8] sm:$0xff] %vm867, %v826
        %892 = vst.msk [vmem:[%s531 + $0xc0] sm:$0xff] %vm867, %v827
        %893 = vst.msk [vmem:[%s531 + $0xc8] sm:$0xff] %vm867, %v828
        %894 = vst.msk [vmem:[%s531 + $0xd0] sm:$0xff] %vm867, %v829
        %895 = vst.msk [vmem:[%s531 + $0xd8] sm:$0xff] %vm867, %v830
        %896 = vst.msk [vmem:[%s531 + $0xe0] sm:$0xff] %vm867, %v831
        %897 = vst.msk [vmem:[%s531 + $0xe8] sm:$0xff] %vm867, %v832
        %898 = vst.msk [vmem:[%s531 + $0xf0] sm:$0xff] %vm867, %v833
        %899 = vst.msk [vmem:[%s531 + $0xf8] sm:$0xff] %vm867, %v834
        %900 = vst.msk [vmem:[%s531 + $0x100] sm:$0xff] %vm867, %v835
        %901 = vst.msk [vmem:[%s531 + $0x108] sm:$0xff] %vm867, %v836
        %902 = vst.msk [vmem:[%s531 + $0x110] sm:$0xff] %vm867, %v837
        %903 = vst.msk [vmem:[%s531 + $0x118] sm:$0xff] %vm867, %v838
        %904 = vst.msk [vmem:[%s531 + $0x120] sm:$0xff] %vm867, %v839
        %905 = vst.msk [vmem:[%s531 + $0x128] sm:$0xff] %vm867, %v840
        %906 = vst.msk [vmem:[%s531 + $0x130] sm:$0xff] %vm867, %v841
        %907 = vst.msk [vmem:[%s531 + $0x138] sm:$0xff] %vm867, %v842
        %908 = vst.msk [vmem:[%s531 + $0x140] sm:$0xff] %vm867, %v843
        %909 = vst.msk [vmem:[%s531 + $0x148] sm:$0xff] %vm867, %v844
        %910 = vst.msk [vmem:[%s531 + $0x150] sm:$0xff] %vm867, %v845
        %911 = vst.msk [vmem:[%s531 + $0x158] sm:$0xff] %vm867, %v846
        %912 = vst.msk [vmem:[%s531 + $0x160] sm:$0xff] %vm867, %v847
        %913 = vst.msk [vmem:[%s531 + $0x168] sm:$0xff] %vm867, %v848
        %914 = vst.msk [vmem:[%s531 + $0x170] sm:$0xff] %vm867, %v849
        %915 = vst.msk [vmem:[%s531 + $0x178] sm:$0xff] %vm867, %v850
        %916 = vst.msk [vmem:[%s531 + $0x180] sm:$0xff] %vm867, %v851
        %917 = vst.msk [vmem:[%s531 + $0x188] sm:$0xff] %vm867, %v852
        %918 = vst.msk [vmem:[%s531 + $0x190] sm:$0xff] %vm867, %v853
        %919 = vst.msk [vmem:[%s531 + $0x198] sm:$0xff] %vm867, %v854
        %920 = vst.msk [vmem:[%s531 + $0x1a0] sm:$0xff] %vm867, %v855
        %921 = vst.msk [vmem:[%s531 + $0x1a8] sm:$0xff] %vm867, %v856
        %922 = vst.msk [vmem:[%s531 + $0x1b0] sm:$0xff] %vm867, %v857
        %923 = vst.msk [vmem:[%s531 + $0x1b8] sm:$0xff] %vm867, %v858
        %924 = vst.msk [vmem:[%s531 + $0x1c0] sm:$0xff] %vm867, %v859
        %925 = vst.msk [vmem:[%s531 + $0x1c8] sm:$0xff] %vm867, %v860
        %926 = vst.msk [vmem:[%s531 + $0x1d0] sm:$0xff] %vm867, %v861
        %927 = vst.msk [vmem:[%s531 + $0x1d8] sm:$0xff] %vm867, %v862
        %928 = vst.msk [vmem:[%s531 + $0x1e0] sm:$0xff] %vm867, %v863
        %929 = vst.msk [vmem:[%s531 + $0x1e8] sm:$0xff] %vm867, %v864
        %930 = vst.msk [vmem:[%s531 + $0x1f0] sm:$0xff] %vm867, %v865
        %931 = vst.msk [vmem:[%s531 + $0x1f8] sm:$0xff] %vm867, %v866
        %v932 = vld [vmem:[%s507] sm:$0xff]
        %v933 = vld [vmem:[%s513] sm:$0xff]
        %935 = vst [vmem:[#allocation1] ss:$4 sm:$0xff] %v932
        %v936 = vld.sshfl [vmem:[#allocation1] sm:$0xff pattern:$0x73625140]
        %v937 = vld.sshfl [vmem:[#allocation1 + $0x8] sm:$0xff pattern:$0x73625140]
        %v938 = vld.sshfl [vmem:[#allocation1 + $0x10] sm:$0xff pattern:$0x73625140]
        %v939 = vld.sshfl [vmem:[#allocation1 + $0x18] sm:$0xff pattern:$0x73625140]
        %s945 = scalar_lea.vmem [#allocation1], 1
        %946 = vst [vmem:[%s945] ss:$4 sm:$0xff] %v933
        %v947 = vld.sshfl [vmem:[#allocation1] sm:$0xff pattern:$0x73625140]
        %v948 = vld.sshfl [vmem:[#allocation1 + $0x8] sm:$0xff pattern:$0x73625140]
        %v949 = vld.sshfl [vmem:[#allocation1 + $0x10] sm:$0xff pattern:$0x73625140]
        %v950 = vld.sshfl [vmem:[#allocation1 + $0x18] sm:$0xff pattern:$0x73625140]
        %vm955 = vcmask 1041408
        %v956 = vsel %vm955, %v936, %v947
        %v957 = vsel %vm955, %v937, %v948
        %v958 = vsel %vm955, %v938, %v949
        %v959 = vsel %vm955, %v939, %v950
        %v960 = vld [vmem:[#allocation2] sm:$0xf]
        %v961 = vld [vmem:[%s519] sm:$0xff]
        %v962 = vld [vmem:[%s519 + $0x8] sm:$0xff]
        %v963 = vld [vmem:[%s519 + $0x10] sm:$0xff]
        %v964 = vld [vmem:[%s519 + $0x18] sm:$0xff]
        %v965 = vld [vmem:[%s519 + $0x20] sm:$0xff]
        %v966 = vld [vmem:[%s519 + $0x28] sm:$0xff]
        %v967 = vld [vmem:[%s519 + $0x30] sm:$0xff]
        %v968 = vld [vmem:[%s519 + $0x38] sm:$0xff]
        %v969 = vld [vmem:[%s519 + $0x40] sm:$0xff]
        %v970 = vld [vmem:[%s519 + $0x48] sm:$0xff]
        %v971 = vld [vmem:[%s519 + $0x50] sm:$0xff]
        %v972 = vld [vmem:[%s519 + $0x58] sm:$0xff]
        %v973 = vld [vmem:[%s519 + $0x60] sm:$0xff]
        %v974 = vld [vmem:[%s519 + $0x68] sm:$0xff]
        %v975 = vld [vmem:[%s519 + $0x70] sm:$0xff]
        %v976 = vld [vmem:[%s519 + $0x78] sm:$0xff]
        %v977 = vld [vmem:[%s519 + $0x80] sm:$0xff]
        %v978 = vld [vmem:[%s519 + $0x88] sm:$0xff]
        %v979 = vld [vmem:[%s519 + $0x90] sm:$0xff]
        %v980 = vld [vmem:[%s519 + $0x98] sm:$0xff]
        %v981 = vld [vmem:[%s519 + $0xa0] sm:$0xff]
        %v982 = vld [vmem:[%s519 + $0xa8] sm:$0xff]
        %v983 = vld [vmem:[%s519 + $0xb0] sm:$0xff]
        %v984 = vld [vmem:[%s519 + $0xb8] sm:$0xff]
        %v985 = vld [vmem:[%s519 + $0xc0] sm:$0xff]
        %v986 = vld [vmem:[%s519 + $0xc8] sm:$0xff]
        %v987 = vld [vmem:[%s519 + $0xd0] sm:$0xff]
        %v988 = vld [vmem:[%s519 + $0xd8] sm:$0xff]
        %v989 = vld [vmem:[%s519 + $0xe0] sm:$0xff]
        %v990 = vld [vmem:[%s519 + $0xe8] sm:$0xff]
        %v991 = vld [vmem:[%s519 + $0xf0] sm:$0xff]
        %v992 = vld [vmem:[%s519 + $0xf8] sm:$0xff]
        %v993 = vld [vmem:[%s519 + $0x100] sm:$0xff]
        %v994 = vld [vmem:[%s519 + $0x108] sm:$0xff]
        %v995 = vld [vmem:[%s519 + $0x110] sm:$0xff]
        %v996 = vld [vmem:[%s519 + $0x118] sm:$0xff]
        %v997 = vld [vmem:[%s519 + $0x120] sm:$0xff]
        %v998 = vld [vmem:[%s519 + $0x128] sm:$0xff]
        %v999 = vld [vmem:[%s519 + $0x130] sm:$0xff]
        %v1000 = vld [vmem:[%s519 + $0x138] sm:$0xff]
        %v1001 = vld [vmem:[%s519 + $0x140] sm:$0xff]
        %v1002 = vld [vmem:[%s519 + $0x148] sm:$0xff]
        %v1003 = vld [vmem:[%s519 + $0x150] sm:$0xff]
        %v1004 = vld [vmem:[%s519 + $0x158] sm:$0xff]
        %v1005 = vld [vmem:[%s519 + $0x160] sm:$0xff]
        %v1006 = vld [vmem:[%s519 + $0x168] sm:$0xff]
        %v1007 = vld [vmem:[%s519 + $0x170] sm:$0xff]
        %v1008 = vld [vmem:[%s519 + $0x178] sm:$0xff]
        %v1009 = vld [vmem:[%s519 + $0x180] sm:$0xff]
        %v1010 = vld [vmem:[%s519 + $0x188] sm:$0xff]
        %v1011 = vld [vmem:[%s519 + $0x190] sm:$0xff]
        %v1012 = vld [vmem:[%s519 + $0x198] sm:$0xff]
        %v1013 = vld [vmem:[%s519 + $0x1a0] sm:$0xff]
        %v1014 = vld [vmem:[%s519 + $0x1a8] sm:$0xff]
        %v1015 = vld [vmem:[%s519 + $0x1b0] sm:$0xff]
        %v1016 = vld [vmem:[%s519 + $0x1b8] sm:$0xff]
        %v1017 = vld [vmem:[%s519 + $0x1c0] sm:$0xff]
        %v1018 = vld [vmem:[%s519 + $0x1c8] sm:$0xff]
        %v1019 = vld [vmem:[%s519 + $0x1d0] sm:$0xff]
        %v1020 = vld [vmem:[%s519 + $0x1d8] sm:$0xff]
        %v1021 = vld [vmem:[%s519 + $0x1e0] sm:$0xff]
        %v1022 = vld [vmem:[%s519 + $0x1e8] sm:$0xff]
        %v1023 = vld [vmem:[%s519 + $0x1f0] sm:$0xff]
        %v1024 = vld [vmem:[%s519 + $0x1f8] sm:$0xff]
        %1025 = vmatpush.msra.mxu0 %v976
        %1026 = vmatpush.msra.mxu0 %v975
        %1027 = vmatpush.msra.mxu0 %v974
        %1028 = vmatpush.msra.mxu0 %v973
        %1029 = vmatpush.msra.mxu0 %v972
        %1030 = vmatpush.msra.mxu0 %v971
        %1031 = vmatpush.msra.mxu0 %v970
        %1032 = vmatpush.msra.mxu0 %v969
        %1033 = vmatpush.msra.mxu0 %v968
        %1034 = vmatpush.msra.mxu0 %v967
        %1035 = vmatpush.msra.mxu0 %v966
        %1036 = vmatpush.msra.mxu0 %v965
        %1037 = vmatpush.msra.mxu0 %v964
        %1038 = vmatpush.msra.mxu0 %v963
        %1039 = vmatpush.msra.mxu0 %v962
        %1040 = vmatpush.msra.mxu0 %v961
        %1041 = vmatmul.f32.gmra.mxu0 %v956
        %v1042 = vpop.f32.mrf.mxu0
        %v1043 = vadd.f32 0.0, %v1042
        %1044 = vdwg.mxu0
        %1045 = vmatpush.msra.mxu0 %v992
        %1046 = vmatpush.msra.mxu0 %v991
        %1047 = vmatpush.msra.mxu0 %v990
        %1048 = vmatpush.msra.mxu0 %v989
        %1049 = vmatpush.msra.mxu0 %v988
        %1050 = vmatpush.msra.mxu0 %v987
        %1051 = vmatpush.msra.mxu0 %v986
        %1052 = vmatpush.msra.mxu0 %v985
        %1053 = vmatpush.msra.mxu0 %v984
        %1054 = vmatpush.msra.mxu0 %v983
        %1055 = vmatpush.msra.mxu0 %v982
        %1056 = vmatpush.msra.mxu0 %v981
        %1057 = vmatpush.msra.mxu0 %v980
        %1058 = vmatpush.msra.mxu0 %v979
        %1059 = vmatpush.msra.mxu0 %v978
        %1060 = vmatpush.msra.mxu0 %v977
        %1061 = vmatmul.f32.gmra.mxu0 %v957
        %v1062 = vpop.f32.mrf.mxu0
        %v1063 = vadd.f32 %v1043, %v1062
        %1064 = vdwg.mxu0
        %1065 = vmatpush.msra.mxu0 %v1008
        %1066 = vmatpush.msra.mxu0 %v1007
        %1067 = vmatpush.msra.mxu0 %v1006
        %1068 = vmatpush.msra.mxu0 %v1005
        %1069 = vmatpush.msra.mxu0 %v1004
        %1070 = vmatpush.msra.mxu0 %v1003
        %1071 = vmatpush.msra.mxu0 %v1002
        %1072 = vmatpush.msra.mxu0 %v1001
        %1073 = vmatpush.msra.mxu0 %v1000
        %1074 = vmatpush.msra.mxu0 %v999
        %1075 = vmatpush.msra.mxu0 %v998
        %1076 = vmatpush.msra.mxu0 %v997
        %1077 = vmatpush.msra.mxu0 %v996
        %1078 = vmatpush.msra.mxu0 %v995
        %1079 = vmatpush.msra.mxu0 %v994
        %1080 = vmatpush.msra.mxu0 %v993
        %1081 = vmatmul.f32.gmra.mxu0 %v958
        %v1082 = vpop.f32.mrf.mxu0
        %v1083 = vadd.f32 %v1063, %v1082
        %1084 = vdwg.mxu0
        %1085 = vmatpush.msra.mxu0 %v1024
        %1086 = vmatpush.msra.mxu0 %v1023
        %1087 = vmatpush.msra.mxu0 %v1022
        %1088 = vmatpush.msra.mxu0 %v1021
        %1089 = vmatpush.msra.mxu0 %v1020
        %1090 = vmatpush.msra.mxu0 %v1019
        %1091 = vmatpush.msra.mxu0 %v1018
        %1092 = vmatpush.msra.mxu0 %v1017
        %1093 = vmatpush.msra.mxu0 %v1016
        %1094 = vmatpush.msra.mxu0 %v1015
        %1095 = vmatpush.msra.mxu0 %v1014
        %1096 = vmatpush.msra.mxu0 %v1013
        %1097 = vmatpush.msra.mxu0 %v1012
        %1098 = vmatpush.msra.mxu0 %v1011
        %1099 = vmatpush.msra.mxu0 %v1010
        %1100 = vmatpush.msra.mxu0 %v1009
        %1101 = vmatmul.f32.gmra.mxu0 %v959
        %v1102 = vpop.f32.mrf.mxu0
        %v1103 = vadd.f32 %v1083, %v1102
        %1104 = vdwg.mxu0
        %v1105 = vadd.f32 %v960, %v1103
        %vm1106 = vcmask 519168
        %1107 = vst.msk [vmem:[#allocation2] sm:$0xf] %vm1106, %v1105
        %v1108 = vld [vmem:[#allocation3] sm:$0xf]
        %1109 = vmatpush.msra.mxu0 %v818
        %1110 = vmatpush.msra.mxu0 %v817
        %1111 = vmatpush.msra.mxu0 %v816
        %1112 = vmatpush.msra.mxu0 %v815
        %1113 = vmatpush.msra.mxu0 %v814
        %1114 = vmatpush.msra.mxu0 %v813
        %1115 = vmatpush.msra.mxu0 %v812
        %1116 = vmatpush.msra.mxu0 %v811
        %1117 = vmatpush.msra.mxu0 %v810
        %1118 = vmatpush.msra.mxu0 %v809
        %1119 = vmatpush.msra.mxu0 %v808
        %1120 = vmatpush.msra.mxu0 %v807
        %1121 = vmatpush.msra.mxu0 %v806
        %1122 = vmatpush.msra.mxu0 %v805
        %1123 = vmatpush.msra.mxu0 %v804
        %1124 = vmatpush.msra.mxu0 %v803
        %1125 = vmatmul.f32.gmra.mxu0 %v956
        %v1126 = vpop.f32.mrf.mxu0
        %v1127 = vadd.f32 0.0, %v1126
        %1128 = vdwg.mxu0
        %1129 = vmatpush.msra.mxu0 %v834
        %1130 = vmatpush.msra.mxu0 %v833
        %1131 = vmatpush.msra.mxu0 %v832
        %1132 = vmatpush.msra.mxu0 %v831
        %1133 = vmatpush.msra.mxu0 %v830
        %1134 = vmatpush.msra.mxu0 %v829
        %1135 = vmatpush.msra.mxu0 %v828
        %1136 = vmatpush.msra.mxu0 %v827
        %1137 = vmatpush.msra.mxu0 %v826
        %1138 = vmatpush.msra.mxu0 %v825
        %1139 = vmatpush.msra.mxu0 %v824
        %1140 = vmatpush.msra.mxu0 %v823
        %1141 = vmatpush.msra.mxu0 %v822
        %1142 = vmatpush.msra.mxu0 %v821
        %1143 = vmatpush.msra.mxu0 %v820
        %1144 = vmatpush.msra.mxu0 %v819
        %1145 = vmatmul.f32.gmra.mxu0 %v957
        %v1146 = vpop.f32.mrf.mxu0
        %v1147 = vadd.f32 %v1127, %v1146
        %1148 = vdwg.mxu0
        %1149 = vmatpush.msra.mxu0 %v850
        %1150 = vmatpush.msra.mxu0 %v849
        %1151 = vmatpush.msra.mxu0 %v848
        %1152 = vmatpush.msra.mxu0 %v847
        %1153 = vmatpush.msra.mxu0 %v846
        %1154 = vmatpush.msra.mxu0 %v845
        %1155 = vmatpush.msra.mxu0 %v844
        %1156 = vmatpush.msra.mxu0 %v843
        %1157 = vmatpush.msra.mxu0 %v842
        %1158 = vmatpush.msra.mxu0 %v841
        %1159 = vmatpush.msra.mxu0 %v840
        %1160 = vmatpush.msra.mxu0 %v839
        %1161 = vmatpush.msra.mxu0 %v838
        %1162 = vmatpush.msra.mxu0 %v837
        %1163 = vmatpush.msra.mxu0 %v836
        %1164 = vmatpush.msra.mxu0 %v835
        %1165 = vmatmul.f32.gmra.mxu0 %v958
        %v1166 = vpop.f32.mrf.mxu0
        %v1167 = vadd.f32 %v1147, %v1166
        %1168 = vdwg.mxu0
        %1169 = vmatpush.msra.mxu0 %v866
        %1170 = vmatpush.msra.mxu0 %v865
        %1171 = vmatpush.msra.mxu0 %v864
        %1172 = vmatpush.msra.mxu0 %v863
        %1173 = vmatpush.msra.mxu0 %v862
        %1174 = vmatpush.msra.mxu0 %v861
        %1175 = vmatpush.msra.mxu0 %v860
        %1176 = vmatpush.msra.mxu0 %v859
        %1177 = vmatpush.msra.mxu0 %v858
        %1178 = vmatpush.msra.mxu0 %v857
        %1179 = vmatpush.msra.mxu0 %v856
        %1180 = vmatpush.msra.mxu0 %v855
        %1181 = vmatpush.msra.mxu0 %v854
        %1182 = vmatpush.msra.mxu0 %v853
        %1183 = vmatpush.msra.mxu0 %v852
        %1184 = vmatpush.msra.mxu0 %v851
        %1185 = vmatmul.f32.gmra.mxu0 %v959
        %v1186 = vpop.f32.mrf.mxu0
        %v1187 = vadd.f32 %v1167, %v1186
        %1188 = vdwg.mxu0
        %v1189 = vadd.f32 %v1108, %v1187
        %1190 = vst.msk [vmem:[#allocation3] sm:$0xf] %vm1106, %v1189
        %p1191 = scmp.eq.s32.totalorder %s27, 1
        // Predicated region
        $region73: #{_forward_impl.1} parent=67 // pred_check
          %p1192 = pneg %p1191
        $region74: #{_forward_impl.1} parent=67 // pred_check_branch
          %1194 = sbr.rel (%p1192) target = $region76
        $region75: #{_forward_impl.1} parent=67 // pred_region
          %v1195 = vld [vmem:[#allocation2] sm:$0xf]
          %v1196 = vld [vmem:[%s3] sm:$0x1]
          %v1198 = vperm.slane %v1196, 0
          %v1200 = vadd.f32 %v1195, %v1198
          %v1201 = vmax.f32 %v1200, 0.0
          %v1202 = vld [vmem:[#allocation3] sm:$0xf]
          %v1203 = vld [vmem:[%s14] sm:$0x1]
          %v1205 = vperm.slane %v1203, 0
          %v1207 = vadd.f32 %v1202, %v1205
          %v1208 = vmax.f32 %v1207, 0.0
          %v1210 = vrot.slane %v1208, 4
          %vm1212 = vcmask 1043456
          %v1213 = vsel %vm1212, %v1201, %v1210
          %v1214 = vld [vmem:[%s6] sm:$0xff]
          %v1215 = vld [vmem:[%s6 + $0x8] sm:$0xff]
          %v1216 = vld [vmem:[%s6 + $0x10] sm:$0xff]
          %v1217 = vld [vmem:[%s6 + $0x18] sm:$0xff]
          %v1218 = vld [vmem:[%s6 + $0x20] sm:$0xff]
          %v1219 = vld [vmem:[%s6 + $0x28] sm:$0xff]
          %v1220 = vld [vmem:[%s6 + $0x30] sm:$0xff]
          %v1221 = vld [vmem:[%s6 + $0x38] sm:$0xff]
          %v1222 = vld [vmem:[%s7] sm:$0x1]
          %v1224 = vperm.slane %v1222, 0
          %v1227 = vsel %vm867, %v1213, 0
          %1229 = vmatpush.msra.mxu0 0.0
          %1230 = vmatpush.msra.mxu0 0.0
          %1231 = vmatpush.msra.mxu0 0.0
          %1232 = vmatpush.msra.mxu0 0.0
          %1233 = vmatpush.msra.mxu0 0.0
          %1234 = vmatpush.msra.mxu0 0.0
          %1235 = vmatpush.msra.mxu0 0.0
          %1236 = vmatpush.msra.mxu0 0.0
          %1237 = vmatpush.msra.mxu0 %v1221
          %1238 = vmatpush.msra.mxu0 %v1220
          %1239 = vmatpush.msra.mxu0 %v1219
          %1240 = vmatpush.msra.mxu0 %v1218
          %1241 = vmatpush.msra.mxu0 %v1217
          %1242 = vmatpush.msra.mxu0 %v1216
          %1243 = vmatpush.msra.mxu0 %v1215
          %1244 = vmatpush.msra.mxu0 %v1214
          %1245 = vmatmul.f32.gmra.mxu0 %v1227
          %v1246 = vpop.f32.mrf.mxu0
          %v1247 = vadd.f32 %v1224, %v1246
          %1248 = vdwg.mxu0
          %v1250 = vrot.slane %v1247, 2
          %v1251 = vrot.slane %v1247, 4
          %v1252 = vrot.slane %v1247, 6
          %vm1256 = vcmask 254976
          %v1257 = vsel %vm1256, %v1247, 0.0
          %v1258 = vrot.slane %v1257, 4
          %v1259 = vadd.f32 %v1257, %v1258
          %v1260 = vrot.slane %v1259, 2
          %v1261 = vadd.f32 %v1259, %v1260
          %v1262 = vrot.slane %v1261, 1
          %v1263 = vadd.f32 %v1261, %v1262
          %v1264 = vsel %vm1256, %v1250, 0.0
          %v1265 = vrot.slane %v1264, 4
          %v1266 = vadd.f32 %v1264, %v1265
          %v1267 = vrot.slane %v1266, 2
          %v1268 = vadd.f32 %v1266, %v1267
          %v1269 = vrot.slane %v1268, 1
          %v1270 = vadd.f32 %v1268, %v1269
          %v1271 = vsel %vm1256, %v1251, 0.0
          %v1272 = vrot.slane %v1271, 4
          %v1273 = vadd.f32 %v1271, %v1272
          %v1274 = vrot.slane %v1273, 2
          %v1275 = vadd.f32 %v1273, %v1274
          %v1276 = vrot.slane %v1275, 1
          %v1277 = vadd.f32 %v1275, %v1276
          %v1278 = vsel %vm1256, %v1252, 0.0
          %v1279 = vrot.slane %v1278, 4
          %v1280 = vadd.f32 %v1278, %v1279
          %v1281 = vrot.slane %v1280, 2
          %v1282 = vadd.f32 %v1280, %v1281
          %v1283 = vrot.slane %v1282, 1
          %v1284 = vadd.f32 %v1282, %v1283
          %v1285 = vrcp.pop 2.0
          %v1286 = vmul.f32 2.0, %v1285
          %v1287 = vsub.f32 1.0, %v1286
          %v1288 = vmul.f32 %v1285, %v1287
          %v1289 = vadd.f32 %v1285, %v1288
          %vm1290 = vweird.f32 %v1285
          %v1291 = vsel %vm1290, %v1285, %v1289
          %v1292 = vmul.f32 %v1263, %v1291
          %v1293 = vmul.f32 %v1270, %v1291
          %v1294 = vmul.f32 %v1277, %v1291
          %v1295 = vmul.f32 %v1284, %v1291
          %v1296 = vsub.f32 %v1247, %v1292
          %v1297 = vsub.f32 %v1250, %v1293
          %v1298 = vsub.f32 %v1251, %v1294
          %v1299 = vsub.f32 %v1252, %v1295
          %v1300 = vmul.f32 %v1296, %v1296
          %v1301 = vmul.f32 %v1297, %v1297
          %v1302 = vmul.f32 %v1298, %v1298
          %v1303 = vmul.f32 %v1299, %v1299
          %v1304 = vsel %vm1256, %v1300, 0.0
          %v1305 = vrot.slane %v1304, 4
          %v1306 = vadd.f32 %v1304, %v1305
          %v1307 = vrot.slane %v1306, 2
          %v1308 = vadd.f32 %v1306, %v1307
          %v1309 = vrot.slane %v1308, 1
          %v1310 = vadd.f32 %v1308, %v1309
          %v1311 = vsel %vm1256, %v1301, 0.0
          %v1312 = vrot.slane %v1311, 4
          %v1313 = vadd.f32 %v1311, %v1312
          %v1314 = vrot.slane %v1313, 2
          %v1315 = vadd.f32 %v1313, %v1314
          %v1316 = vrot.slane %v1315, 1
          %v1317 = vadd.f32 %v1315, %v1316
          %v1318 = vsel %vm1256, %v1302, 0.0
          %v1319 = vrot.slane %v1318, 4
          %v1320 = vadd.f32 %v1318, %v1319
          %v1321 = vrot.slane %v1320, 2
          %v1322 = vadd.f32 %v1320, %v1321
          %v1323 = vrot.slane %v1322, 1
          %v1324 = vadd.f32 %v1322, %v1323
          %v1325 = vsel %vm1256, %v1303, 0.0
          %v1326 = vrot.slane %v1325, 4
          %v1327 = vadd.f32 %v1325, %v1326
          %v1328 = vrot.slane %v1327, 2
          %v1329 = vadd.f32 %v1327, %v1328
          %v1330 = vrot.slane %v1329, 1
          %v1331 = vadd.f32 %v1329, %v1330
          %v1332 = vmul.f32 %v1310, %v1291
          %v1333 = vmul.f32 %v1317, %v1291
          %v1334 = vmul.f32 %v1324, %v1291
          %v1335 = vmul.f32 %v1331, %v1291
          %v1336 = vadd.f32 %v1332, 1e-05
          %v1337 = vadd.f32 %v1333, 1e-05
          %v1338 = vadd.f32 %v1334, 1e-05
          %v1339 = vadd.f32 %v1335, 1e-05
          %v1340 = vrsqrt.pop %v1336
          %v1341 = vmul.f32 %v1340, %v1336
          %v1342 = vmul.f32 %v1341, %v1340
          %v1343 = vmul.f32 0.5, %v1342
          %v1344 = vsub.f32 1.5, %v1343
          %v1345 = vmul.f32 %v1340, %v1344
          %vm1346 = vweird.f32 %v1336
          %vm1347 = vweird.f32 %v1340
          %vm1348 = vmor %vm1346, %vm1347
          %v1349 = vsel %vm1348, %v1340, %v1345
          %v1350 = vrsqrt.pop %v1337
          %v1351 = vmul.f32 %v1350, %v1337
          %v1352 = vmul.f32 %v1351, %v1350
          %v1353 = vmul.f32 0.5, %v1352
          %v1354 = vsub.f32 1.5, %v1353
          %v1355 = vmul.f32 %v1350, %v1354
          %vm1356 = vweird.f32 %v1337
          %vm1357 = vweird.f32 %v1350
          %vm1358 = vmor %vm1356, %vm1357
          %v1359 = vsel %vm1358, %v1350, %v1355
          %v1360 = vrsqrt.pop %v1338
          %v1361 = vmul.f32 %v1360, %v1338
          %v1362 = vmul.f32 %v1361, %v1360
          %v1363 = vmul.f32 0.5, %v1362
          %v1364 = vsub.f32 1.5, %v1363
          %v1365 = vmul.f32 %v1360, %v1364
          %vm1366 = vweird.f32 %v1338
          %vm1367 = vweird.f32 %v1360
          %vm1368 = vmor %vm1366, %vm1367
          %v1369 = vsel %vm1368, %v1360, %v1365
          %v1370 = vrsqrt.pop %v1339
          %v1371 = vmul.f32 %v1370, %v1339
          %v1372 = vmul.f32 %v1371, %v1370
          %v1373 = vmul.f32 0.5, %v1372
          %v1374 = vsub.f32 1.5, %v1373
          %v1375 = vmul.f32 %v1370, %v1374
          %vm1376 = vweird.f32 %v1339
          %vm1377 = vweird.f32 %v1370
          %vm1378 = vmor %vm1376, %vm1377
          %v1379 = vsel %vm1378, %v1370, %v1375
          %v1380 = vmul.f32 %v1296, %v1349
          %v1381 = vmul.f32 %v1297, %v1359
          %v1382 = vmul.f32 %v1298, %v1369
          %v1383 = vmul.f32 %v1299, %v1379
          %v1384 = vld [vmem:[%s8] sm:$0x1]
          %v1386 = vperm.slane %v1384, 0
          %v1388 = vmul.f32 %v1386, %v1380
          %v1389 = vmul.f32 %v1386, %v1381
          %v1390 = vmul.f32 %v1386, %v1382
          %v1391 = vmul.f32 %v1386, %v1383
          %v1392 = vld [vmem:[%s9] sm:$0x1]
          %v1394 = vperm.slane %v1392, 0
          %v1396 = vadd.f32 %v1388, %v1394
          %v1397 = vadd.f32 %v1389, %v1394
          %v1398 = vadd.f32 %v1390, %v1394
          %v1399 = vadd.f32 %v1391, %v1394
          %v1400 = vmax.f32 %v1396, 0.0
          %v1401 = vmax.f32 %v1397, 0.0
          %v1402 = vmax.f32 %v1398, 0.0
          %v1403 = vmax.f32 %v1399, 0.0
          %v1404 = vld [vmem:[%s10] sm:$0xff]
          %v1405 = vld [vmem:[%s10 + $0x8] sm:$0xff]
          %v1406 = vld [vmem:[%s10 + $0x10] sm:$0xff]
          %v1407 = vld [vmem:[%s10 + $0x18] sm:$0xff]
          %v1408 = vld [vmem:[%s11] sm:$0x1]
          %v1410 = vperm.slane %v1408, 0
          %1416 = vst [vmem:[#allocation1] ss:$4 sm:$0xff] %v1400
          %s1417 = scalar_lea.vmem [#allocation1], 1
          %1418 = vst [vmem:[%s1417] ss:$4 sm:$0xff] %v1401
          %s1419 = scalar_lea.vmem [#allocation1], 2
          %1420 = vst [vmem:[%s1419] ss:$4 sm:$0xff] %v1402
          %s1421 = scalar_lea.vmem [#allocation1], 3
          %1422 = vst [vmem:[%s1421] ss:$4 sm:$0xff] %v1403
          %v1423 = vld.sshfl [vmem:[#allocation1] sm:$0xff pattern:$0x73625140]
          %vm1424 = vcmask 261120
          %v1425 = vsel %vm1424, %v1423, 0
          %1427 = vmatpush.msra.mxu0 0.0
          %1428 = vmatpush.msra.mxu0 0.0
          %1429 = vmatpush.msra.mxu0 0.0
          %1430 = vmatpush.msra.mxu0 0.0
          %1431 = vmatpush.msra.mxu0 0.0
          %1432 = vmatpush.msra.mxu0 0.0
          %1433 = vmatpush.msra.mxu0 0.0
          %1434 = vmatpush.msra.mxu0 0.0
          %1435 = vmatpush.msra.mxu0 0.0
          %1436 = vmatpush.msra.mxu0 0.0
          %1437 = vmatpush.msra.mxu0 0.0
          %1438 = vmatpush.msra.mxu0 0.0
          %1439 = vmatpush.msra.mxu0 %v1407
          %1440 = vmatpush.msra.mxu0 %v1406
          %1441 = vmatpush.msra.mxu0 %v1405
          %1442 = vmatpush.msra.mxu0 %v1404
          %1443 = vmatmul.f32.gmra.mxu0 %v1425
          %v1444 = vpop.f32.mrf.mxu0
          %v1445 = vadd.f32 %v1410, %v1444
          %1446 = vdwg.mxu0
          %vm1447 = vcmask 130048
          %1448 = vst.msk [vmem:[#allocation4] sm:$0xff] %vm1447, %v1445
        $region76: #{_forward_impl.1} parent=67 // pred_fallthru
          _
        %s1449 = smul.u32 64, %s27
        %p1450 = scmp.lt.s32.totalorder %s1449, 127
        %s1451 = scalar_select %p1450, %s1449, 127
        %s1452 = smul.addr %s1451, 8
        %s1453 = scalar_lea.vmem %s13, %s1452
        // Predicated region
        $region77: #{_forward_impl.1} parent=67 // pred_check
          %p1454 = pneg %p312
        $region78: #{_forward_impl.1} parent=67 // pred_check_branch
          %1456 = sbr.rel (%p1454) target = $region80
        $region79: #{_forward_impl.1} parent=67 // pred_region
          %1458 = vsyncadd [#allocation5], 0
          %s1460 = sshll.u32 [#allocation4], 4
          %s1461 = int_to_ptr.vmem [resolvable:$true] %s1460
          %s1462 = sshll.u32 %s12, 4
          %s1463 = int_to_ptr.hbm [resolvable:$true] %s1462
          %1465 = dma.vmem_to_hbm [thread:$0]  %s1461, 128, %s1463, [#allocation5]
        $region80: #{_forward_impl.1} parent=67 // pred_fallthru
          _
        // Predicated region
        $region81: #{_forward_impl.1} parent=67 // pred_check
          %p1466 = pneg %p338
        $region82: #{_forward_impl.1} parent=67 // pred_check_branch
          %1468 = sbr.rel (%p1466) target = $region84
        $region83: #{_forward_impl.1} parent=67 // pred_region
          %s1469 = smul.u32 64, %s27
        $region84: #{_forward_impl.1} parent=67 // pred_fallthru
          _
        // Predicated region
        $region85: #{_forward_impl.1} parent=67 // pred_check
          %p1470 = pneg %p359
        $region86: #{_forward_impl.1} parent=67 // pred_check_branch
          %1472 = sbr.rel (%p1470) target = $region88
        $region87: #{_forward_impl.1} parent=67 // pred_region
          _
        $region88: #{_forward_impl.1} parent=67 // pred_fallthru
          _
        // Predicated region
        $region89: #{_forward_impl.1} parent=67 // pred_check
          %p1473 = pneg %p312
        $region90: #{_forward_impl.1} parent=67 // pred_check_branch
          %1475 = sbr.rel (%p1473) target = $region92
        $region91: #{_forward_impl.1} parent=67 // pred_region
          %1477 = dma.done [#allocation5], 128
        $region92: #{_forward_impl.1} parent=67 // pred_fallthru
          _
        // Predicated region
        $region93: #{_forward_impl.1} parent=67 // pred_check
          %p1478 = pneg %p359
        $region94: #{_forward_impl.1} parent=67 // pred_check_branch
          %1480 = sbr.rel (%p1478) target = $region96
        $region95: #{_forward_impl.1} parent=67 // pred_region
          _
        $region96: #{_forward_impl.1} parent=67 // pred_fallthru
          _
      $region68: #{_forward_impl.1} parent=5 // pred_fallthru
        _
      %p1481 = scmp.le.s32.totalorder 2, %s22
      // Predicated region
      $region97: #{_forward_impl.1} parent=5 // pred_check
        %p1482 = pneg %p1481
      $region98: #{_forward_impl.1} parent=5 // pred_check_branch
        %1484 = sbr.rel (%p1482) target = $region100
      $region99: #{_forward_impl.1} parent=5 // pred_region
        %s1485 = ssub.s32 %s22, 2
        // Predicated region
        $region101: #{_forward_impl.1} parent=99 // pred_check
          %p1486 = pneg %p344
        $region102: #{_forward_impl.1} parent=99 // pred_check_branch
          %1488 = sbr.rel (%p1486) target = $region104
        $region103: #{_forward_impl.1} parent=99 // pred_region
          %s1489 = smul.u32 64, %s28
          %p1490 = scmp.lt.s32.totalorder %s1489, 127
          %s1491 = scalar_select %p1490, %s1489, 127
          %s1492 = smul.addr %s1491, 8
          %s1493 = scalar_lea.vmem %s13, %s1492
        $region104: #{_forward_impl.1} parent=99 // pred_fallthru
          _
      $region100: #{_forward_impl.1} parent=5 // pred_fallthru
        _
    $region6: #{_forward_impl.1} parent=1 // loop_footer
      %s26 = sadd.s32 1, %s22
    $region7: #{_forward_impl.1} parent=1 // loop_footer_branch
      %21 = sbr.rel target = $region3
    $region8: #{_forward_impl.1} parent=1 // loop_exit
      _
    %1494 = vsyncpa [#allocation5], 1
    %s1495 = scalar_lea.sflag [#allocation5], 1
    %1496 = vsyncpa %s1495, 1

</llo_original>
